<compile_context>
chip_gen: v7x
topology: tpu7x:2x2x1
jax: 0.10.0
libtpu: 0.0.40
codegen_flags: <defaults>
</compile_context>

<pallas_src>
import functools

import jax
import jax.numpy as jnp
import numpy as np
from jax.experimental import pallas as pl
from jax.experimental.pallas import tpu as pltpu


def _light_attention_kernel(x_ref, mask_ref, w_ref, b_ref, o_ref, col_ref):
    """Per-block (TB batch rows) LightAttention forward.

    x_ref   : (TB, C_in, L)        unpadded input block, channel-major
    mask_ref: (TB, L)              1.0 = valid, 0.0 = masked
    w_ref   : (2*C_out, K*C_in)    stacked feat|attn conv weights, im2col order
    b_ref   : (2*C_out, 1)         stacked biases
    o_ref   : (TB, 2*C_out)        fused output: [:, :C_out]=o1, [:, C_out:]=o2
    col_ref : (K*C_in, TB*L)       VMEM im2col scratch
    """
    tb, c_in, seq_len = x_ref.shape
    two_c_out, kc = w_ref.shape
    c_out = two_c_out // 2
    k_taps = kc // c_in
    pad = k_taps // 2
    cdt = col_ref.dtype

    # ---- im2col into VMEM scratch -------------------------------------------
    # col[k*C_in + ci, t*L + l] = x[t, ci, l + k - pad], zero where out of range
    # (this realises the Conv1d zero padding in-kernel; no wrapper jnp.pad).
    for t in range(tb):
        c_base = t * seq_len
        for k in range(k_taps):
            lo = k - pad
            dst0 = max(0, -lo)
            dst1 = min(seq_len, seq_len - lo)
            r0, r1 = k * c_in, (k + 1) * c_in
            if dst1 <= dst0:                              # tap fully out of range
                col_ref[r0:r1, c_base:c_base + seq_len] = jnp.zeros(
                    (c_in, seq_len), cdt)
                continue
            if dst0 > 0:                                  # left boundary zeros
                col_ref[r0:r1, c_base:c_base + dst0] = jnp.zeros(
                    (c_in, dst0), cdt)
            if dst1 < seq_len:                            # right boundary zeros
                col_ref[r0:r1, c_base + dst1:c_base + seq_len] = jnp.zeros(
                    (c_in, seq_len - dst1), cdt)
            col_ref[r0:r1, c_base + dst0:c_base + dst1] = x_ref[
                t, :, dst0 + lo:dst1 + lo]

    # ---- both convolutions as ONE MXU matmul ---------------------------------
    y = jnp.dot(w_ref[...], col_ref[...], preferred_element_type=jnp.float32)
    y = y + b_ref[...]                                    # (2*C_out, TB*L)

    # ---- per-row masked softmax + attention pooling + max pooling ------------
    o1_cols, o2_cols = [], []
    for t in range(tb):
        f_t = y[:c_out, t * seq_len:(t + 1) * seq_len]    # (C_out, L) feat conv
        a_t = y[c_out:, t * seq_len:(t + 1) * seq_len]    # (C_out, L) attn conv
        m_t = mask_ref[t:t + 1, :]                        # (1, L)
        a_t = jnp.where(m_t > 0.0, a_t, -jnp.inf)         # masked_fill(-inf)
        mx = jnp.max(a_t, axis=-1, keepdims=True)
        e = jnp.exp(a_t - mx)
        den = jnp.sum(e, axis=-1, keepdims=True)          # (C_out, 1)
        num = jnp.sum(f_t * e, axis=-1, keepdims=True)    # (C_out, 1)
        o1_cols.append(num * pl.reciprocal(den))          # softmax-weighted sum
        o2_cols.append(jnp.max(f_t, axis=-1, keepdims=True))  # max pool
    out_cols = jnp.concatenate(
        [jnp.concatenate(o1_cols, axis=1),
         jnp.concatenate(o2_cols, axis=1)], axis=0)       # (2*C_out, TB)
    o_ref[...] = out_cols.T.astype(o_ref.dtype)           # (TB, 2*C_out)


@functools.partial(jax.jit, static_argnames=("block_b", "use_bf16"))
def light_attention(x, seq_mask, w_feat, b_feat, w_attn, b_attn,
                    *, block_b=8, use_bf16=False):
    """x: (B, C_in, L) float32; seq_mask: (B, 1, L) bool.
    w_*: (C_out, C_in, K) (PyTorch Conv1d layout); b_*: (C_out,).
    Returns (B, 2*C_out) = cat([attention-weighted sum, max-pool], dim=-1)."""
    B, C_in, L = x.shape
    C_out, _, K = w_feat.shape

    # Batch blocking: TB == B (single full block) when B is small, otherwise a
    # multiple of 8 so the batch-tiled sublane dims of mask/out blocks are legal.
    if B <= block_b:
        tb = B
    else:
        tb = max(8, (block_b // 8) * 8)
    n_blk = -(-B // tb)
    b_pad = n_blk * tb

    compute_dtype = jnp.bfloat16 if use_bf16 else x.dtype

    # Stacked + im2col-ordered weights: w2[co, k*C_in + ci] = w[co, ci, k].
    w_both = jnp.concatenate([w_feat, w_attn], axis=0)            # (2C_out, C_in, K)
    w2 = jnp.transpose(w_both, (0, 2, 1)).reshape(2 * C_out, K * C_in)
    w2 = w2.astype(compute_dtype)
    b2 = jnp.concatenate([b_feat, b_attn], axis=0).reshape(2 * C_out, 1)
    xc = x.astype(compute_dtype)
    mask2 = seq_mask.reshape(B, L).astype(jnp.float32)

    if b_pad != B:                                                # pad batch only
        xc = jnp.pad(xc, ((0, b_pad - B), (0, 0), (0, 0)))
        mask2 = jnp.pad(mask2, ((0, b_pad - B), (0, 0)))

    out = pl.pallas_call(
        _light_attention_kernel,
        out_shape=jax.ShapeDtypeStruct((b_pad, 2 * C_out), jnp.float32),
        grid_spec=pltpu.PrefetchScalarGridSpec(
            num_scalar_prefetch=0,
            grid=(n_blk,),
            in_specs=[
                pl.BlockSpec((tb, C_in, L), lambda b: (b, 0, 0)),        # x
                pl.BlockSpec((tb, L), lambda b: (b, 0)),                 # mask
                pl.BlockSpec((2 * C_out, K * C_in), lambda b: (0, 0)),   # weights
                pl.BlockSpec((2 * C_out, 1), lambda b: (0, 0)),          # bias
            ],
            out_specs=pl.BlockSpec((tb, 2 * C_out), lambda b: (b, 0)),
            scratch_shapes=[pltpu.VMEM((K * C_in, tb * L), compute_dtype)],
        ),
        compiler_params=pltpu.CompilerParams(
            dimension_semantics=("parallel",),       # lets v7x megacore split B
            vmem_limit_bytes=32 * 1024 * 1024),
    )(xc, mask2, w2, b2)

    return out[:B]


def _reference(x, seq_mask, w_feat, b_feat, w_attn, b_attn):
    """Pure-JAX reference mirroring the PyTorch forward (eval mode)."""
    K = w_feat.shape[-1]
    pad = K // 2
    dn = ("NCH", "OIH", "NCH")
    feat = jax.lax.conv_general_dilated(x, w_feat, (1,), [(pad, pad)],
                                        dimension_numbers=dn) + b_feat[None, :, None]
    attn = jax.lax.conv_general_dilated(x, w_attn, (1,), [(pad, pad)],
                                        dimension_numbers=dn) + b_attn[None, :, None]
    attn = jnp.where(seq_mask, attn, -jnp.inf)
    attn = jax.nn.softmax(attn, axis=-1)
    o1 = jnp.sum(feat * attn, axis=-1)
    o2 = jnp.max(feat, axis=-1)
    return jnp.concatenate([o1, o2], axis=-1)


if __name__ == "__main__":
    C_IN, C_OUT, K, L = 32, 32, 9, 16

    key = jax.random.PRNGKey(0)
    kx1, kwf, kbf, kwa, kba, kx2 = jax.random.split(key, 6)

    w_feat = 0.1 * jax.random.normal(kwf, (C_OUT, C_IN, K), dtype=jnp.float32)
    b_feat = 0.1 * jax.random.normal(kbf, (C_OUT,), dtype=jnp.float32)
    w_attn = 0.1 * jax.random.normal(kwa, (C_OUT, C_IN, K), dtype=jnp.float32)
    b_attn = 0.1 * jax.random.normal(kba, (C_OUT,), dtype=jnp.float32)

    # --- test 1: small batch -> single grid step (block == full batch) -------
    B1 = 2
    x1 = jax.random.normal(kx1, (B1, C_IN, L), dtype=jnp.float32)
    lens1 = jnp.array([12, 16], dtype=jnp.int32)
    mask1 = (jnp.arange(L)[None, None, :] < lens1[:, None, None])
    out1 = jax.block_until_ready(
        light_attention(x1, mask1, w_feat, b_feat, w_attn, b_attn))
    ref1 = _reference(x1, mask1, w_feat, b_feat, w_attn, b_attn)
    np.testing.assert_allclose(np.asarray(out1), np.asarray(ref1),
                               rtol=1e-3, atol=1e-4)
    assert out1.shape == (B1, 2 * C_OUT)

    # --- test 2: batch-blocked grid (TB=8, B=20 padded to 24, 3 grid steps) --
    B2 = 20
    x2 = jax.random.normal(kx2, (B2, C_IN, L), dtype=jnp.float32)
    lens2 = (jnp.arange(B2, dtype=jnp.int32) % 12) + 5        # lengths in [5, 16]
    mask2 = (jnp.arange(L)[None, None, :] < lens2[:, None, None])
    out2 = jax.block_until_ready(
        light_attention(x2, mask2, w_feat, b_feat, w_attn, b_attn))
    ref2 = _reference(x2, mask2, w_feat, b_feat, w_attn, b_attn)
    np.testing.assert_allclose(np.asarray(out2), np.asarray(ref2),
                               rtol=1e-3, atol=1e-4)
    assert out2.shape == (B2, 2 * C_OUT)

    # --- test 3: bf16 matmul path (loose tolerance for bf16 rounding) --------
    out3 = jax.block_until_ready(
        light_attention(x2, mask2, w_feat, b_feat, w_attn, b_attn, use_bf16=True))
    np.testing.assert_allclose(np.asarray(out3), np.asarray(ref2),
                               rtol=1e-1, atol=1e-1)

    print("KERNEL_OK")
</pallas_src>

<mosaic_0001>
module attributes {stable_mosaic.version = 11 : i64} {
  func.func @_light_attention_kernel(%arg0: i32, %arg1: memref<2x32x16xf32, #tpu.memory_space<vmem>>, %arg2: memref<2x16xf32, #tpu.memory_space<vmem>>, %arg3: memref<64x288xf32, #tpu.memory_space<vmem>>, %arg4: memref<64x1xf32, #tpu.memory_space<vmem>>, %arg5: memref<2x64xf32, #tpu.memory_space<vmem>>, %arg6: memref<288x32xf32, #tpu.memory_space<vmem>>) attributes {dimension_semantics = [#tpu.dimension_semantics<parallel>], iteration_bounds = array<i64: 1>, scalar_prefetch = 0 : i64, scratch_operands = 1 : i64, tpu.core_type = #tpu.core_type<tc>, window_params = [{transform_indices = @transform_0, window_bounds = array<i64: 2, 32, 16>}, {transform_indices = @transform_1, window_bounds = array<i64: 2, 16>}, {pipeline_mode = #tpu.pipeline_mode<synchronous>, transform_indices = @transform_2, window_bounds = array<i64: 64, 288>}, {pipeline_mode = #tpu.pipeline_mode<synchronous>, transform_indices = @transform_3, window_bounds = array<i64: 64, 1>}, {transform_indices = @transform_4, window_bounds = array<i64: 2, 64>}]} {
    %cst = arith.constant 0.000000e+00 : f32
    %0 = vector.broadcast %cst : f32 to vector<32x4xf32>
    %c0 = arith.constant 0 : index
    %c0_0 = arith.constant 0 : index
    %1 = vector.load %arg6[%c0, %c0_0] : memref<288x32xf32, #tpu.memory_space<vmem>>, vector<32x4xf32>
    tpu.vector_store %arg6[%c0, %c0_0], %0 {strides = array<i32>} : memref<288x32xf32, #tpu.memory_space<vmem>>, vector<32x4xf32>,
    %c0_1 = arith.constant 0 : index
    %c0_2 = arith.constant 0 : index
    %c0_3 = arith.constant 0 : index
    %2 = vector.load %arg1[%c0_1, %c0_2, %c0_3] : memref<2x32x16xf32, #tpu.memory_space<vmem>>, vector<1x32x12xf32>
    %3 = vector.shape_cast %2 : vector<1x32x12xf32> to vector<32x12xf32>
    %c0_4 = arith.constant 0 : index
    %c4 = arith.constant 4 : index
    %4 = vector.load %arg6[%c0_4, %c4] : memref<288x32xf32, #tpu.memory_space<vmem>>, vector<32x12xf32>
    tpu.vector_store %arg6[%c0_4, %c4], %3 {strides = array<i32>} : memref<288x32xf32, #tpu.memory_space<vmem>>, vector<32x12xf32>,
    %cst_5 = arith.constant 0.000000e+00 : f32
    %5 = vector.broadcast %cst_5 : f32 to vector<32x3xf32>
    %c32 = arith.constant 32 : index
    %c0_6 = arith.constant 0 : index
    %6 = vector.load %arg6[%c32, %c0_6] : memref<288x32xf32, #tpu.memory_space<vmem>>, vector<32x3xf32>
    tpu.vector_store %arg6[%c32, %c0_6], %5 {strides = array<i32>} : memref<288x32xf32, #tpu.memory_space<vmem>>, vector<32x3xf32>,
    %c0_7 = arith.constant 0 : index
    %c0_8 = arith.constant 0 : index
    %c0_9 = arith.constant 0 : index
    %7 = vector.load %arg1[%c0_7, %c0_8, %c0_9] : memref<2x32x16xf32, #tpu.memory_space<vmem>>, vector<1x32x13xf32>
    %8 = vector.shape_cast %7 : vector<1x32x13xf32> to vector<32x13xf32>
    %c32_10 = arith.constant 32 : index
    %c3 = arith.constant 3 : index
    %9 = vector.load %arg6[%c32_10, %c3] : memref<288x32xf32, #tpu.memory_space<vmem>>, vector<32x13xf32>
    tpu.vector_store %arg6[%c32_10, %c3], %8 {strides = array<i32>} : memref<288x32xf32, #tpu.memory_space<vmem>>, vector<32x13xf32>,
    %cst_11 = arith.constant 0.000000e+00 : f32
    %10 = vector.broadcast %cst_11 : f32 to vector<32x2xf32>
    %c64 = arith.constant 64 : index
    %c0_12 = arith.constant 0 : index
    %11 = vector.load %arg6[%c64, %c0_12] : memref<288x32xf32, #tpu.memory_space<vmem>>, vector<32x2xf32>
    tpu.vector_store %arg6[%c64, %c0_12], %10 {strides = array<i32>} : memref<288x32xf32, #tpu.memory_space<vmem>>, vector<32x2xf32>,
    %c0_13 = arith.constant 0 : index
    %c0_14 = arith.constant 0 : index
    %c0_15 = arith.constant 0 : index
    %12 = vector.load %arg1[%c0_13, %c0_14, %c0_15] : memref<2x32x16xf32, #tpu.memory_space<vmem>>, vector<1x32x14xf32>
    %13 = vector.shape_cast %12 : vector<1x32x14xf32> to vector<32x14xf32>
    %c64_16 = arith.constant 64 : index
    %c2 = arith.constant 2 : index
    %14 = vector.load %arg6[%c64_16, %c2] : memref<288x32xf32, #tpu.memory_space<vmem>>, vector<32x14xf32>
    tpu.vector_store %arg6[%c64_16, %c2], %13 {strides = array<i32>} : memref<288x32xf32, #tpu.memory_space<vmem>>, vector<32x14xf32>,
    %cst_17 = arith.constant 0.000000e+00 : f32
    %15 = vector.broadcast %cst_17 : f32 to vector<32x1xf32>
    %c96 = arith.constant 96 : index
    %c0_18 = arith.constant 0 : index
    %16 = vector.load %arg6[%c96, %c0_18] : memref<288x32xf32, #tpu.memory_space<vmem>>, vector<32x1xf32>
    tpu.vector_store %arg6[%c96, %c0_18], %15 {strides = array<i32>} : memref<288x32xf32, #tpu.memory_space<vmem>>, vector<32x1xf32>,
    %c0_19 = arith.constant 0 : index
    %c0_20 = arith.constant 0 : index
    %c0_21 = arith.constant 0 : index
    %17 = vector.load %arg1[%c0_19, %c0_20, %c0_21] : memref<2x32x16xf32, #tpu.memory_space<vmem>>, vector<1x32x15xf32>
    %18 = vector.shape_cast %17 : vector<1x32x15xf32> to vector<32x15xf32>
    %c96_22 = arith.constant 96 : index
    %c1 = arith.constant 1 : index
    %19 = vector.load %arg6[%c96_22, %c1] : memref<288x32xf32, #tpu.memory_space<vmem>>, vector<32x15xf32>
    tpu.vector_store %arg6[%c96_22, %c1], %18 {strides = array<i32>} : memref<288x32xf32, #tpu.memory_space<vmem>>, vector<32x15xf32>,
    %c0_23 = arith.constant 0 : index
    %c0_24 = arith.constant 0 : index
    %c0_25 = arith.constant 0 : index
    %20 = vector.load %arg1[%c0_23, %c0_24, %c0_25] : memref<2x32x16xf32, #tpu.memory_space<vmem>>, vector<1x32x16xf32>
    %21 = vector.shape_cast %20 : vector<1x32x16xf32> to vector<32x16xf32>
    %c128 = arith.constant 128 : index
    %c0_26 = arith.constant 0 : index
    %22 = vector.load %arg6[%c128, %c0_26] : memref<288x32xf32, #tpu.memory_space<vmem>>, vector<32x16xf32>
    tpu.vector_store %arg6[%c128, %c0_26], %21 {strides = array<i32>} : memref<288x32xf32, #tpu.memory_space<vmem>>, vector<32x16xf32>,
    %cst_27 = arith.constant 0.000000e+00 : f32
    %23 = vector.broadcast %cst_27 : f32 to vector<32x1xf32>
    %c160 = arith.constant 160 : index
    %c15 = arith.constant 15 : index
    %24 = vector.load %arg6[%c160, %c15] : memref<288x32xf32, #tpu.memory_space<vmem>>, vector<32x1xf32>
    tpu.vector_store %arg6[%c160, %c15], %23 {strides = array<i32>} : memref<288x32xf32, #tpu.memory_space<vmem>>, vector<32x1xf32>,
    %c0_28 = arith.constant 0 : index
    %c0_29 = arith.constant 0 : index
    %c1_30 = arith.constant 1 : index
    %25 = vector.load %arg1[%c0_28, %c0_29, %c1_30] : memref<2x32x16xf32, #tpu.memory_space<vmem>>, vector<1x32x15xf32>
    %26 = vector.shape_cast %25 : vector<1x32x15xf32> to vector<32x15xf32>
    %c160_31 = arith.constant 160 : index
    %c0_32 = arith.constant 0 : index
    %27 = vector.load %arg6[%c160_31, %c0_32] : memref<288x32xf32, #tpu.memory_space<vmem>>, vector<32x15xf32>
    tpu.vector_store %arg6[%c160_31, %c0_32], %26 {strides = array<i32>} : memref<288x32xf32, #tpu.memory_space<vmem>>, vector<32x15xf32>,
    %cst_33 = arith.constant 0.000000e+00 : f32
    %28 = vector.broadcast %cst_33 : f32 to vector<32x2xf32>
    %c192 = arith.constant 192 : index
    %c14 = arith.constant 14 : index
    %29 = vector.load %arg6[%c192, %c14] : memref<288x32xf32, #tpu.memory_space<vmem>>, vector<32x2xf32>
    tpu.vector_store %arg6[%c192, %c14], %28 {strides = array<i32>} : memref<288x32xf32, #tpu.memory_space<vmem>>, vector<32x2xf32>,
    %c0_34 = arith.constant 0 : index
    %c0_35 = arith.constant 0 : index
    %c2_36 = arith.constant 2 : index
    %30 = vector.load %arg1[%c0_34, %c0_35, %c2_36] : memref<2x32x16xf32, #tpu.memory_space<vmem>>, vector<1x32x14xf32>
    %31 = vector.shape_cast %30 : vector<1x32x14xf32> to vector<32x14xf32>
    %c192_37 = arith.constant 192 : index
    %c0_38 = arith.constant 0 : index
    %32 = vector.load %arg6[%c192_37, %c0_38] : memref<288x32xf32, #tpu.memory_space<vmem>>, vector<32x14xf32>
    tpu.vector_store %arg6[%c192_37, %c0_38], %31 {strides = array<i32>} : memref<288x32xf32, #tpu.memory_space<vmem>>, vector<32x14xf32>,
    %cst_39 = arith.constant 0.000000e+00 : f32
    %33 = vector.broadcast %cst_39 : f32 to vector<32x3xf32>
    %c224 = arith.constant 224 : index
    %c13 = arith.constant 13 : index
    %34 = vector.load %arg6[%c224, %c13] : memref<288x32xf32, #tpu.memory_space<vmem>>, vector<32x3xf32>
    tpu.vector_store %arg6[%c224, %c13], %33 {strides = array<i32>} : memref<288x32xf32, #tpu.memory_space<vmem>>, vector<32x3xf32>,
    %c0_40 = arith.constant 0 : index
    %c0_41 = arith.constant 0 : index
    %c3_42 = arith.constant 3 : index
    %35 = vector.load %arg1[%c0_40, %c0_41, %c3_42] : memref<2x32x16xf32, #tpu.memory_space<vmem>>, vector<1x32x13xf32>
    %36 = vector.shape_cast %35 : vector<1x32x13xf32> to vector<32x13xf32>
    %c224_43 = arith.constant 224 : index
    %c0_44 = arith.constant 0 : index
    %37 = vector.load %arg6[%c224_43, %c0_44] : memref<288x32xf32, #tpu.memory_space<vmem>>, vector<32x13xf32>
    tpu.vector_store %arg6[%c224_43, %c0_44], %36 {strides = array<i32>} : memref<288x32xf32, #tpu.memory_space<vmem>>, vector<32x13xf32>,
    %cst_45 = arith.constant 0.000000e+00 : f32
    %38 = vector.broadcast %cst_45 : f32 to vector<32x4xf32>
    %c256 = arith.constant 256 : index
    %c12 = arith.constant 12 : index
    %39 = vector.load %arg6[%c256, %c12] : memref<288x32xf32, #tpu.memory_space<vmem>>, vector<32x4xf32>
    tpu.vector_store %arg6[%c256, %c12], %38 {strides = array<i32>} : memref<288x32xf32, #tpu.memory_space<vmem>>, vector<32x4xf32>,
    %c0_46 = arith.constant 0 : index
    %c0_47 = arith.constant 0 : index
    %c4_48 = arith.constant 4 : index
    %40 = vector.load %arg1[%c0_46, %c0_47, %c4_48] : memref<2x32x16xf32, #tpu.memory_space<vmem>>, vector<1x32x12xf32>
    %41 = vector.shape_cast %40 : vector<1x32x12xf32> to vector<32x12xf32>
    %c256_49 = arith.constant 256 : index
    %c0_50 = arith.constant 0 : index
    %42 = vector.load %arg6[%c256_49, %c0_50] : memref<288x32xf32, #tpu.memory_space<vmem>>, vector<32x12xf32>
    tpu.vector_store %arg6[%c256_49, %c0_50], %41 {strides = array<i32>} : memref<288x32xf32, #tpu.memory_space<vmem>>, vector<32x12xf32>,
    %cst_51 = arith.constant 0.000000e+00 : f32
    %43 = vector.broadcast %cst_51 : f32 to vector<32x4xf32>
    %c0_52 = arith.constant 0 : index
    %c16 = arith.constant 16 : index
    %44 = vector.load %arg6[%c0_52, %c16] : memref<288x32xf32, #tpu.memory_space<vmem>>, vector<32x4xf32>
    tpu.vector_store %arg6[%c0_52, %c16], %43 {strides = array<i32>} : memref<288x32xf32, #tpu.memory_space<vmem>>, vector<32x4xf32>,
    %c1_53 = arith.constant 1 : index
    %c0_54 = arith.constant 0 : index
    %c0_55 = arith.constant 0 : index
    %45 = vector.load %arg1[%c1_53, %c0_54, %c0_55] : memref<2x32x16xf32, #tpu.memory_space<vmem>>, vector<1x32x12xf32>
    %46 = vector.shape_cast %45 : vector<1x32x12xf32> to vector<32x12xf32>
    %c0_56 = arith.constant 0 : index
    %c20 = arith.constant 20 : index
    %47 = vector.load %arg6[%c0_56, %c20] : memref<288x32xf32, #tpu.memory_space<vmem>>, vector<32x12xf32>
    tpu.vector_store %arg6[%c0_56, %c20], %46 {strides = array<i32>} : memref<288x32xf32, #tpu.memory_space<vmem>>, vector<32x12xf32>,
    %cst_57 = arith.constant 0.000000e+00 : f32
    %48 = vector.broadcast %cst_57 : f32 to vector<32x3xf32>
    %c32_58 = arith.constant 32 : index
    %c16_59 = arith.constant 16 : index
    %49 = vector.load %arg6[%c32_58, %c16_59] : memref<288x32xf32, #tpu.memory_space<vmem>>, vector<32x3xf32>
    tpu.vector_store %arg6[%c32_58, %c16_59], %48 {strides = array<i32>} : memref<288x32xf32, #tpu.memory_space<vmem>>, vector<32x3xf32>,
    %c1_60 = arith.constant 1 : index
    %c0_61 = arith.constant 0 : index
    %c0_62 = arith.constant 0 : index
    %50 = vector.load %arg1[%c1_60, %c0_61, %c0_62] : memref<2x32x16xf32, #tpu.memory_space<vmem>>, vector<1x32x13xf32>
    %51 = vector.shape_cast %50 : vector<1x32x13xf32> to vector<32x13xf32>
    %c32_63 = arith.constant 32 : index
    %c19 = arith.constant 19 : index
    %52 = vector.load %arg6[%c32_63, %c19] : memref<288x32xf32, #tpu.memory_space<vmem>>, vector<32x13xf32>
    tpu.vector_store %arg6[%c32_63, %c19], %51 {strides = array<i32>} : memref<288x32xf32, #tpu.memory_space<vmem>>, vector<32x13xf32>,
    %cst_64 = arith.constant 0.000000e+00 : f32
    %53 = vector.broadcast %cst_64 : f32 to vector<32x2xf32>
    %c64_65 = arith.constant 64 : index
    %c16_66 = arith.constant 16 : index
    %54 = vector.load %arg6[%c64_65, %c16_66] : memref<288x32xf32, #tpu.memory_space<vmem>>, vector<32x2xf32>
    tpu.vector_store %arg6[%c64_65, %c16_66], %53 {strides = array<i32>} : memref<288x32xf32, #tpu.memory_space<vmem>>, vector<32x2xf32>,
    %c1_67 = arith.constant 1 : index
    %c0_68 = arith.constant 0 : index
    %c0_69 = arith.constant 0 : index
    %55 = vector.load %arg1[%c1_67, %c0_68, %c0_69] : memref<2x32x16xf32, #tpu.memory_space<vmem>>, vector<1x32x14xf32>
    %56 = vector.shape_cast %55 : vector<1x32x14xf32> to vector<32x14xf32>
    %c64_70 = arith.constant 64 : index
    %c18 = arith.constant 18 : index
    %57 = vector.load %arg6[%c64_70, %c18] : memref<288x32xf32, #tpu.memory_space<vmem>>, vector<32x14xf32>
    tpu.vector_store %arg6[%c64_70, %c18], %56 {strides = array<i32>} : memref<288x32xf32, #tpu.memory_space<vmem>>, vector<32x14xf32>,
    %cst_71 = arith.constant 0.000000e+00 : f32
    %58 = vector.broadcast %cst_71 : f32 to vector<32x1xf32>
    %c96_72 = arith.constant 96 : index
    %c16_73 = arith.constant 16 : index
    %59 = vector.load %arg6[%c96_72, %c16_73] : memref<288x32xf32, #tpu.memory_space<vmem>>, vector<32x1xf32>
    tpu.vector_store %arg6[%c96_72, %c16_73], %58 {strides = array<i32>} : memref<288x32xf32, #tpu.memory_space<vmem>>, vector<32x1xf32>,
    %c1_74 = arith.constant 1 : index
    %c0_75 = arith.constant 0 : index
    %c0_76 = arith.constant 0 : index
    %60 = vector.load %arg1[%c1_74, %c0_75, %c0_76] : memref<2x32x16xf32, #tpu.memory_space<vmem>>, vector<1x32x15xf32>
    %61 = vector.shape_cast %60 : vector<1x32x15xf32> to vector<32x15xf32>
    %c96_77 = arith.constant 96 : index
    %c17 = arith.constant 17 : index
    %62 = vector.load %arg6[%c96_77, %c17] : memref<288x32xf32, #tpu.memory_space<vmem>>, vector<32x15xf32>
    tpu.vector_store %arg6[%c96_77, %c17], %61 {strides = array<i32>} : memref<288x32xf32, #tpu.memory_space<vmem>>, vector<32x15xf32>,
    %c1_78 = arith.constant 1 : index
    %c0_79 = arith.constant 0 : index
    %c0_80 = arith.constant 0 : index
    %63 = vector.load %arg1[%c1_78, %c0_79, %c0_80] : memref<2x32x16xf32, #tpu.memory_space<vmem>>, vector<1x32x16xf32>
    %64 = vector.shape_cast %63 : vector<1x32x16xf32> to vector<32x16xf32>
    %c128_81 = arith.constant 128 : index
    %c16_82 = arith.constant 16 : index
    %65 = vector.load %arg6[%c128_81, %c16_82] : memref<288x32xf32, #tpu.memory_space<vmem>>, vector<32x16xf32>
    tpu.vector_store %arg6[%c128_81, %c16_82], %64 {strides = array<i32>} : memref<288x32xf32, #tpu.memory_space<vmem>>, vector<32x16xf32>,
    %cst_83 = arith.constant 0.000000e+00 : f32
    %66 = vector.broadcast %cst_83 : f32 to vector<32x1xf32>
    %c160_84 = arith.constant 160 : index
    %c31 = arith.constant 31 : index
    %67 = vector.load %arg6[%c160_84, %c31] : memref<288x32xf32, #tpu.memory_space<vmem>>, vector<32x1xf32>
    tpu.vector_store %arg6[%c160_84, %c31], %66 {strides = array<i32>} : memref<288x32xf32, #tpu.memory_space<vmem>>, vector<32x1xf32>,
    %c1_85 = arith.constant 1 : index
    %c0_86 = arith.constant 0 : index
    %c1_87 = arith.constant 1 : index
    %68 = vector.load %arg1[%c1_85, %c0_86, %c1_87] : memref<2x32x16xf32, #tpu.memory_space<vmem>>, vector<1x32x15xf32>
    %69 = vector.shape_cast %68 : vector<1x32x15xf32> to vector<32x15xf32>
    %c160_88 = arith.constant 160 : index
    %c16_89 = arith.constant 16 : index
    %70 = vector.load %arg6[%c160_88, %c16_89] : memref<288x32xf32, #tpu.memory_space<vmem>>, vector<32x15xf32>
    tpu.vector_store %arg6[%c160_88, %c16_89], %69 {strides = array<i32>} : memref<288x32xf32, #tpu.memory_space<vmem>>, vector<32x15xf32>,
    %cst_90 = arith.constant 0.000000e+00 : f32
    %71 = vector.broadcast %cst_90 : f32 to vector<32x2xf32>
    %c192_91 = arith.constant 192 : index
    %c30 = arith.constant 30 : index
    %72 = vector.load %arg6[%c192_91, %c30] : memref<288x32xf32, #tpu.memory_space<vmem>>, vector<32x2xf32>
    tpu.vector_store %arg6[%c192_91, %c30], %71 {strides = array<i32>} : memref<288x32xf32, #tpu.memory_space<vmem>>, vector<32x2xf32>,
    %c1_92 = arith.constant 1 : index
    %c0_93 = arith.constant 0 : index
    %c2_94 = arith.constant 2 : index
    %73 = vector.load %arg1[%c1_92, %c0_93, %c2_94] : memref<2x32x16xf32, #tpu.memory_space<vmem>>, vector<1x32x14xf32>
    %74 = vector.shape_cast %73 : vector<1x32x14xf32> to vector<32x14xf32>
    %c192_95 = arith.constant 192 : index
    %c16_96 = arith.constant 16 : index
    %75 = vector.load %arg6[%c192_95, %c16_96] : memref<288x32xf32, #tpu.memory_space<vmem>>, vector<32x14xf32>
    tpu.vector_store %arg6[%c192_95, %c16_96], %74 {strides = array<i32>} : memref<288x32xf32, #tpu.memory_space<vmem>>, vector<32x14xf32>,
    %cst_97 = arith.constant 0.000000e+00 : f32
    %76 = vector.broadcast %cst_97 : f32 to vector<32x3xf32>
    %c224_98 = arith.constant 224 : index
    %c29 = arith.constant 29 : index
    %77 = vector.load %arg6[%c224_98, %c29] : memref<288x32xf32, #tpu.memory_space<vmem>>, vector<32x3xf32>
    tpu.vector_store %arg6[%c224_98, %c29], %76 {strides = array<i32>} : memref<288x32xf32, #tpu.memory_space<vmem>>, vector<32x3xf32>,
    %c1_99 = arith.constant 1 : index
    %c0_100 = arith.constant 0 : index
    %c3_101 = arith.constant 3 : index
    %78 = vector.load %arg1[%c1_99, %c0_100, %c3_101] : memref<2x32x16xf32, #tpu.memory_space<vmem>>, vector<1x32x13xf32>
    %79 = vector.shape_cast %78 : vector<1x32x13xf32> to vector<32x13xf32>
    %c224_102 = arith.constant 224 : index
    %c16_103 = arith.constant 16 : index
    %80 = vector.load %arg6[%c224_102, %c16_103] : memref<288x32xf32, #tpu.memory_space<vmem>>, vector<32x13xf32>
    tpu.vector_store %arg6[%c224_102, %c16_103], %79 {strides = array<i32>} : memref<288x32xf32, #tpu.memory_space<vmem>>, vector<32x13xf32>,
    %cst_104 = arith.constant 0.000000e+00 : f32
    %81 = vector.broadcast %cst_104 : f32 to vector<32x4xf32>
    %c256_105 = arith.constant 256 : index
    %c28 = arith.constant 28 : index
    %82 = vector.load %arg6[%c256_105, %c28] : memref<288x32xf32, #tpu.memory_space<vmem>>, vector<32x4xf32>
    tpu.vector_store %arg6[%c256_105, %c28], %81 {strides = array<i32>} : memref<288x32xf32, #tpu.memory_space<vmem>>, vector<32x4xf32>,
    %c1_106 = arith.constant 1 : index
    %c0_107 = arith.constant 0 : index
    %c4_108 = arith.constant 4 : index
    %83 = vector.load %arg1[%c1_106, %c0_107, %c4_108] : memref<2x32x16xf32, #tpu.memory_space<vmem>>, vector<1x32x12xf32>
    %84 = vector.shape_cast %83 : vector<1x32x12xf32> to vector<32x12xf32>
    %c256_109 = arith.constant 256 : index
    %c16_110 = arith.constant 16 : index
    %85 = vector.load %arg6[%c256_109, %c16_110] : memref<288x32xf32, #tpu.memory_space<vmem>>, vector<32x12xf32>
    tpu.vector_store %arg6[%c256_109, %c16_110], %84 {strides = array<i32>} : memref<288x32xf32, #tpu.memory_space<vmem>>, vector<32x12xf32>,
    %c0_111 = arith.constant 0 : index
    %c0_112 = arith.constant 0 : index
    %86 = vector.load %arg3[%c0_111, %c0_112] : memref<64x288xf32, #tpu.memory_space<vmem>>, vector<64x288xf32>
    %c0_113 = arith.constant 0 : index
    %c0_114 = arith.constant 0 : index
    %87 = vector.load %arg6[%c0_113, %c0_114] : memref<288x32xf32, #tpu.memory_space<vmem>>, vector<288x32xf32>
    %cst_115 = arith.constant dense<0.000000e+00> : vector<64x32xf32>
    %88 = tpu.matmul %86, %87, %cst_115 {dimension_numbers = #tpu.dot_dimension_numbers<[1], [0], [0], [1], [0, 0, 1, 1], [], []>} : vector<64x288xf32>, vector<288x32xf32>, vector<64x32xf32> -> vector<64x32xf32>
    %c0_116 = arith.constant 0 : index
    %c0_117 = arith.constant 0 : index
    %89 = vector.load %arg4[%c0_116, %c0_117] : memref<64x1xf32, #tpu.memory_space<vmem>>, vector<64x1xf32>
    %90 = vector.broadcast %89 : vector<64x1xf32> to vector<64x32xf32>
    %91 = arith.addf %88, %90 : vector<64x32xf32>
    %92 = vector.extract_strided_slice %91 {offsets = [0, 0], sizes = [32, 16], strides = [1, 1]} : vector<64x32xf32> to vector<32x16xf32>
    %93 = vector.extract_strided_slice %91 {offsets = [32, 0], sizes = [32, 16], strides = [1, 1]} : vector<64x32xf32> to vector<32x16xf32>
    %c0_118 = arith.constant 0 : index
    %c0_119 = arith.constant 0 : index
    %94 = vector.load %arg2[%c0_118, %c0_119] : memref<2x16xf32, #tpu.memory_space<vmem>>, vector<1x16xf32>
    %cst_120 = arith.constant 0.000000e+00 : f32
    %95 = vector.broadcast %cst_120 : f32 to vector<1x16xf32>
    %96 = arith.cmpf ogt, %94, %95 : vector<1x16xf32>
    %cst_121 = arith.constant 0xFF800000 : f32
    %97 = vector.shape_cast %96 : vector<1x16xi1> to vector<1x16xi1>
    %98 = vector.broadcast %97 : vector<1x16xi1> to vector<32x16xi1>
    %99 = vector.broadcast %cst_121 : f32 to vector<32x16xf32>
    %100 = arith.select %98, %93, %99 : vector<32x16xi1>, vector<32x16xf32>
    %cst_122 = arith.constant dense<0xFF800000> : vector<32xf32>
    %101 = vector.multi_reduction <maximumf>, %100, %cst_122 [1] : vector<32x16xf32> to vector<32xf32>
    %102 = vector.shape_cast %101 : vector<32xf32> to vector<32x1xf32>
    %103 = vector.broadcast %102 : vector<32x1xf32> to vector<32x16xf32>
    %104 = arith.subf %100, %103 : vector<32x16xf32>
    %105 = math.exp %104 : vector<32x16xf32>
    %cst_123 = arith.constant dense<0.000000e+00> : vector<32xf32>
    %106 = vector.multi_reduction <add>, %105, %cst_123 [1] : vector<32x16xf32> to vector<32xf32>
    %107 = vector.shape_cast %106 : vector<32xf32> to vector<32x1xf32>
    %108 = arith.mulf %92, %105 : vector<32x16xf32>
    %cst_124 = arith.constant dense<0.000000e+00> : vector<32xf32>
    %109 = vector.multi_reduction <add>, %108, %cst_124 [1] : vector<32x16xf32> to vector<32xf32>
    %110 = vector.shape_cast %109 : vector<32xf32> to vector<32x1xf32>
    %111 = tpu.reciprocal %107 : vector<32x1xf32> -> vector<32x1xf32>
    %112 = arith.mulf %110, %111 : vector<32x1xf32>
    %cst_125 = arith.constant dense<0xFF800000> : vector<32xf32>
    %113 = vector.multi_reduction <maximumf>, %92, %cst_125 [1] : vector<32x16xf32> to vector<32xf32>
    %114 = vector.shape_cast %113 : vector<32xf32> to vector<32x1xf32>
    %115 = vector.extract_strided_slice %91 {offsets = [0, 16], sizes = [32, 16], strides = [1, 1]} : vector<64x32xf32> to vector<32x16xf32>
    %116 = vector.extract_strided_slice %91 {offsets = [32, 16], sizes = [32, 16], strides = [1, 1]} : vector<64x32xf32> to vector<32x16xf32>
    %c1_126 = arith.constant 1 : index
    %c0_127 = arith.constant 0 : index
    %117 = vector.load %arg2[%c1_126, %c0_127] : memref<2x16xf32, #tpu.memory_space<vmem>>, vector<1x16xf32>
    %cst_128 = arith.constant 0.000000e+00 : f32
    %118 = vector.broadcast %cst_128 : f32 to vector<1x16xf32>
    %119 = arith.cmpf ogt, %117, %118 : vector<1x16xf32>
    %cst_129 = arith.constant 0xFF800000 : f32
    %120 = vector.shape_cast %119 : vector<1x16xi1> to vector<1x16xi1>
    %121 = vector.broadcast %120 : vector<1x16xi1> to vector<32x16xi1>
    %122 = vector.broadcast %cst_129 : f32 to vector<32x16xf32>
    %123 = arith.select %121, %116, %122 : vector<32x16xi1>, vector<32x16xf32>
    %cst_130 = arith.constant dense<0xFF800000> : vector<32xf32>
    %124 = vector.multi_reduction <maximumf>, %123, %cst_130 [1] : vector<32x16xf32> to vector<32xf32>
    %125 = vector.shape_cast %124 : vector<32xf32> to vector<32x1xf32>
    %126 = vector.broadcast %125 : vector<32x1xf32> to vector<32x16xf32>
    %127 = arith.subf %123, %126 : vector<32x16xf32>
    %128 = math.exp %127 : vector<32x16xf32>
    %cst_131 = arith.constant dense<0.000000e+00> : vector<32xf32>
    %129 = vector.multi_reduction <add>, %128, %cst_131 [1] : vector<32x16xf32> to vector<32xf32>
    %130 = vector.shape_cast %129 : vector<32xf32> to vector<32x1xf32>
    %131 = arith.mulf %115, %128 : vector<32x16xf32>
    %cst_132 = arith.constant dense<0.000000e+00> : vector<32xf32>
    %132 = vector.multi_reduction <add>, %131, %cst_132 [1] : vector<32x16xf32> to vector<32xf32>
    %133 = vector.shape_cast %132 : vector<32xf32> to vector<32x1xf32>
    %134 = tpu.reciprocal %130 : vector<32x1xf32> -> vector<32x1xf32>
    %135 = arith.mulf %133, %134 : vector<32x1xf32>
    %cst_133 = arith.constant dense<0xFF800000> : vector<32xf32>
    %136 = vector.multi_reduction <maximumf>, %115, %cst_133 [1] : vector<32x16xf32> to vector<32xf32>
    %137 = vector.shape_cast %136 : vector<32xf32> to vector<32x1xf32>
    %138 = tpu.concatenate %112, %135 in 1 : vector<32x1xf32>, vector<32x1xf32> -> vector<32x2xf32>
    %139 = tpu.concatenate %114, %137 in 1 : vector<32x1xf32>, vector<32x1xf32> -> vector<32x2xf32>
    %140 = tpu.concatenate %138, %139 in 0 : vector<32x2xf32>, vector<32x2xf32> -> vector<64x2xf32>
    %141 = tpu.transpose %140, [1, 0] : vector<64x2xf32> -> vector<2x64xf32>
    %c0_134 = arith.constant 0 : index
    %c0_135 = arith.constant 0 : index
    %142 = vector.load %arg5[%c0_134, %c0_135] : memref<2x64xf32, #tpu.memory_space<vmem>>, vector<2x64xf32>
    tpu.vector_store %arg5[%c0_134, %c0_135], %141 {strides = array<i32>} : memref<2x64xf32, #tpu.memory_space<vmem>>, vector<2x64xf32>,
    return
  }
  func.func @transform_0(%arg0: i32) -> (i32, i32, i32) {
    %c0_i32 = arith.constant 0 : i32
    %c0_i32_0 = arith.constant 0 : i32
    %c0_i32_1 = arith.constant 0 : i32
    return %arg0, %c0_i32, %c0_i32_0 : i32, i32, i32
  }
  func.func @transform_1(%arg0: i32) -> (i32, i32) {
    %c0_i32 = arith.constant 0 : i32
    %c0_i32_0 = arith.constant 0 : i32
    return %arg0, %c0_i32 : i32, i32
  }
  func.func @transform_2(%arg0: i32) -> (i32, i32) {
    %c0_i32 = arith.constant 0 : i32
    %c0_i32_0 = arith.constant 0 : i32
    %c0_i32_1 = arith.constant 0 : i32
    return %c0_i32, %c0_i32_0 : i32, i32
  }
  func.func @transform_3(%arg0: i32) -> (i32, i32) {
    %c0_i32 = arith.constant 0 : i32
    %c0_i32_0 = arith.constant 0 : i32
    %c0_i32_1 = arith.constant 0 : i32
    return %c0_i32, %c0_i32_0 : i32, i32
  }
  func.func @transform_4(%arg0: i32) -> (i32, i32) {
    %c0_i32 = arith.constant 0 : i32
    %c0_i32_0 = arith.constant 0 : i32
    return %arg0, %c0_i32 : i32, i32
  }
}

</mosaic_0001>

<llo_original>
// kernel: light_attention.1
$region0: #{light_attention.1}
  #allocation0 [shape = 'u32[]', space=smem, size = 0x4, offset = 0x4, fixed_abs, tag = 'smem constant byte address 0x4 - core index']
  #allocation1 [shape = 'u32[144,128]{1,0:T(1,128)}', space=vmem, size = 0x12000, scoped, tag = 'internal scratch']
  #allocation2 [shape = 'f32[288,32]{1,0:T(8,128)}', space=vmem, size = 0x24000, scoped, tag = 'scratch operand']
  %s0 = inlined_call_operand.vmem [shape: f32[2,32,16], index: 0, kind: input, shape index: {}]
  %s1 = inlined_call_operand.vmem [shape: f32[2,16], index: 1, kind: input, shape index: {}]
  %s2 = inlined_call_operand.vmem [shape: f32[64,288], index: 2, kind: input, shape index: {}]
  %s3 = inlined_call_operand.vmem [shape: f32[64,1], index: 3, kind: input, shape index: {}]
  %s4 = inlined_call_operand.hbm [shape: f32[2,64], index: 4, kind: output, shape index: {}]
  %s5 = sld [smem:[#allocation0]]
  $region26: #{light_attention.1} parent=0
    _
  %s7 = ssub.s32 1, %s5
  %s8 = scalar_select 0, %s7, %s5
  $region1: #{light_attention.1} parent=0
    #allocation3 [shape = 'u8[1024]{0}', space=vmem, size = 0x400, scoped, tag = 'output window, operand 0, single buffered']
    #allocation4 [shape = 's32[1]{0}', space=sflag, size = 0x4, scoped, tag = 'scoped memory for light_attention.1']
    %9 = vsyncpa [#allocation4], 0
    // Predicated region
    $region2: #{light_attention.1} parent=1 // pred_check
      _
    $region3: #{light_attention.1} parent=1 // pred_check_branch
      %11 = sbr.rel (0) target = $region5
    $region4: #{light_attention.1} parent=1 // pred_region
      _
    $region5: #{light_attention.1} parent=1 // pred_fallthru
      _
    // Predicated region
    $region6: #{light_attention.1} parent=1 // pred_check
      _
    $region7: #{light_attention.1} parent=1 // pred_check_branch
      %13 = sbr.rel (0) target = $region9
    $region8: #{light_attention.1} parent=1 // pred_region
      _
    $region9: #{light_attention.1} parent=1 // pred_fallthru
      _
    // Predicated region
    $region10: #{light_attention.1} parent=1 // pred_check
      _
    $region11: #{light_attention.1} parent=1 // pred_check_branch
      %15 = sbr.rel (0) target = $region13
    $region12: #{light_attention.1} parent=1 // pred_region
      _
    $region13: #{light_attention.1} parent=1 // pred_fallthru
      _
    // Predicated region
    $region14: #{light_attention.1} parent=1 // pred_check
      _
    $region15: #{light_attention.1} parent=1 // pred_check_branch
      %17 = sbr.rel (0) target = $region17
    $region16: #{light_attention.1} parent=1 // pred_region
      _
    $region17: #{light_attention.1} parent=1 // pred_fallthru
      _
    %vm18 = vcmask 31744
    %19 = vst.msk [vmem:[#allocation2] sm:$0xff] %vm18, 0.0
    %20 = vst.msk [vmem:[#allocation2 + $0x8] sm:$0xff] %vm18, 0.0
    %21 = vst.msk [vmem:[#allocation2 + $0x10] sm:$0xff] %vm18, 0.0
    %22 = vst.msk [vmem:[#allocation2 + $0x18] sm:$0xff] %vm18, 0.0
    %v23 = vld [vmem:[%s0] sm:$0xff]
    %v24 = vld [vmem:[%s0 + $0x8] sm:$0xff]
    %v25 = vld [vmem:[%s0 + $0x10] sm:$0xff]
    %v26 = vld [vmem:[%s0 + $0x18] sm:$0xff]
    %31 = vrot.lane.b32.xlu0 %v23, 4
    %v32 = vpop.permute.xlu0 %31
    %33 = vrot.lane.b32.xlu0 %v24, 4
    %v34 = vpop.permute.xlu0 %33
    %35 = vrot.lane.b32.xlu0 %v25, 4
    %v36 = vpop.permute.xlu0 %35
    %37 = vrot.lane.b32.xlu0 %v26, 4
    %v38 = vpop.permute.xlu0 %37
    %vm43 = vcmask 130080
    %44 = vst.msk [vmem:[#allocation2] sm:$0xff] %vm43, %v32
    %45 = vst.msk [vmem:[#allocation2 + $0x8] sm:$0xff] %vm43, %v34
    %46 = vst.msk [vmem:[#allocation2 + $0x10] sm:$0xff] %vm43, %v36
    %47 = vst.msk [vmem:[#allocation2 + $0x18] sm:$0xff] %vm43, %v38
    %vm48 = vcmask 23552
    %49 = vst.msk [vmem:[#allocation2 + $0x20] sm:$0xff] %vm48, 0.0
    %50 = vst.msk [vmem:[#allocation2 + $0x28] sm:$0xff] %vm48, 0.0
    %51 = vst.msk [vmem:[#allocation2 + $0x30] sm:$0xff] %vm48, 0.0
    %52 = vst.msk [vmem:[#allocation2 + $0x38] sm:$0xff] %vm48, 0.0
    %v53 = vld [vmem:[%s0] sm:$0xff]
    %v54 = vld [vmem:[%s0 + $0x8] sm:$0xff]
    %v55 = vld [vmem:[%s0 + $0x10] sm:$0xff]
    %v56 = vld [vmem:[%s0 + $0x18] sm:$0xff]
    %61 = vrot.lane.b32.xlu0 %v53, 3
    %v62 = vpop.permute.xlu0 %61
    %63 = vrot.lane.b32.xlu0 %v54, 3
    %v64 = vpop.permute.xlu0 %63
    %65 = vrot.lane.b32.xlu0 %v55, 3
    %v66 = vpop.permute.xlu0 %65
    %67 = vrot.lane.b32.xlu0 %v56, 3
    %v68 = vpop.permute.xlu0 %67
    %vm73 = vcmask 130072
    %74 = vst.msk [vmem:[#allocation2 + $0x20] sm:$0xff] %vm73, %v62
    %75 = vst.msk [vmem:[#allocation2 + $0x28] sm:$0xff] %vm73, %v64
    %76 = vst.msk [vmem:[#allocation2 + $0x30] sm:$0xff] %vm73, %v66
    %77 = vst.msk [vmem:[#allocation2 + $0x38] sm:$0xff] %vm73, %v68
    %vm78 = vcmask 15360
    %79 = vst.msk [vmem:[#allocation2 + $0x40] sm:$0xff] %vm78, 0.0
    %80 = vst.msk [vmem:[#allocation2 + $0x48] sm:$0xff] %vm78, 0.0
    %81 = vst.msk [vmem:[#allocation2 + $0x50] sm:$0xff] %vm78, 0.0
    %82 = vst.msk [vmem:[#allocation2 + $0x58] sm:$0xff] %vm78, 0.0
    %v83 = vld [vmem:[%s0] sm:$0xff]
    %v84 = vld [vmem:[%s0 + $0x8] sm:$0xff]
    %v85 = vld [vmem:[%s0 + $0x10] sm:$0xff]
    %v86 = vld [vmem:[%s0 + $0x18] sm:$0xff]
    %91 = vrot.lane.b32.xlu0 %v83, 2
    %v92 = vpop.permute.xlu0 %91
    %93 = vrot.lane.b32.xlu0 %v84, 2
    %v94 = vpop.permute.xlu0 %93
    %95 = vrot.lane.b32.xlu0 %v85, 2
    %v96 = vpop.permute.xlu0 %95
    %97 = vrot.lane.b32.xlu0 %v86, 2
    %v98 = vpop.permute.xlu0 %97
    %vm103 = vcmask 130064
    %104 = vst.msk [vmem:[#allocation2 + $0x40] sm:$0xff] %vm103, %v92
    %105 = vst.msk [vmem:[#allocation2 + $0x48] sm:$0xff] %vm103, %v94
    %106 = vst.msk [vmem:[#allocation2 + $0x50] sm:$0xff] %vm103, %v96
    %107 = vst.msk [vmem:[#allocation2 + $0x58] sm:$0xff] %vm103, %v98
    %vm108 = vcmask 7168
    %109 = vst.msk [vmem:[#allocation2 + $0x60] sm:$0xff] %vm108, 0.0
    %110 = vst.msk [vmem:[#allocation2 + $0x68] sm:$0xff] %vm108, 0.0
    %111 = vst.msk [vmem:[#allocation2 + $0x70] sm:$0xff] %vm108, 0.0
    %112 = vst.msk [vmem:[#allocation2 + $0x78] sm:$0xff] %vm108, 0.0
    %v113 = vld [vmem:[%s0] sm:$0xff]
    %v114 = vld [vmem:[%s0 + $0x8] sm:$0xff]
    %v115 = vld [vmem:[%s0 + $0x10] sm:$0xff]
    %v116 = vld [vmem:[%s0 + $0x18] sm:$0xff]
    %121 = vrot.lane.b32.xlu0 %v113, 1
    %v122 = vpop.permute.xlu0 %121
    %123 = vrot.lane.b32.xlu0 %v114, 1
    %v124 = vpop.permute.xlu0 %123
    %125 = vrot.lane.b32.xlu0 %v115, 1
    %v126 = vpop.permute.xlu0 %125
    %127 = vrot.lane.b32.xlu0 %v116, 1
    %v128 = vpop.permute.xlu0 %127
    %vm133 = vcmask 130056
    %134 = vst.msk [vmem:[#allocation2 + $0x60] sm:$0xff] %vm133, %v122
    %135 = vst.msk [vmem:[#allocation2 + $0x68] sm:$0xff] %vm133, %v124
    %136 = vst.msk [vmem:[#allocation2 + $0x70] sm:$0xff] %vm133, %v126
    %137 = vst.msk [vmem:[#allocation2 + $0x78] sm:$0xff] %vm133, %v128
    %v138 = vld [vmem:[%s0] sm:$0xff]
    %v139 = vld [vmem:[%s0 + $0x8] sm:$0xff]
    %v140 = vld [vmem:[%s0 + $0x10] sm:$0xff]
    %v141 = vld [vmem:[%s0 + $0x18] sm:$0xff]
    %vm142 = vcmask 130048
    %143 = vst.msk [vmem:[#allocation2 + $0x80] sm:$0xff] %vm142, %v138
    %144 = vst.msk [vmem:[#allocation2 + $0x88] sm:$0xff] %vm142, %v139
    %145 = vst.msk [vmem:[#allocation2 + $0x90] sm:$0xff] %vm142, %v140
    %146 = vst.msk [vmem:[#allocation2 + $0x98] sm:$0xff] %vm142, %v141
    %vm147 = vcmask 130168
    %148 = vst.msk [vmem:[#allocation2 + $0xa0] sm:$0xff] %vm147, 0.0
    %149 = vst.msk [vmem:[#allocation2 + $0xa8] sm:$0xff] %vm147, 0.0
    %150 = vst.msk [vmem:[#allocation2 + $0xb0] sm:$0xff] %vm147, 0.0
    %151 = vst.msk [vmem:[#allocation2 + $0xb8] sm:$0xff] %vm147, 0.0
    %v152 = vld [vmem:[%s0] sm:$0xff]
    %v153 = vld [vmem:[%s0 + $0x8] sm:$0xff]
    %v154 = vld [vmem:[%s0 + $0x10] sm:$0xff]
    %v155 = vld [vmem:[%s0 + $0x18] sm:$0xff]
    %160 = vrot.lane.b32.xlu0 %v152, 127
    %v161 = vpop.permute.xlu0 %160
    %162 = vrot.lane.b32.xlu0 %v153, 127
    %v163 = vpop.permute.xlu0 %162
    %164 = vrot.lane.b32.xlu0 %v154, 127
    %v165 = vpop.permute.xlu0 %164
    %166 = vrot.lane.b32.xlu0 %v155, 127
    %v167 = vpop.permute.xlu0 %166
    %vm172 = vcmask 121856
    %173 = vst.msk [vmem:[#allocation2 + $0xa0] sm:$0xff] %vm172, %v161
    %174 = vst.msk [vmem:[#allocation2 + $0xa8] sm:$0xff] %vm172, %v163
    %175 = vst.msk [vmem:[#allocation2 + $0xb0] sm:$0xff] %vm172, %v165
    %176 = vst.msk [vmem:[#allocation2 + $0xb8] sm:$0xff] %vm172, %v167
    %vm177 = vcmask 130160
    %178 = vst.msk [vmem:[#allocation2 + $0xc0] sm:$0xff] %vm177, 0.0
    %179 = vst.msk [vmem:[#allocation2 + $0xc8] sm:$0xff] %vm177, 0.0
    %180 = vst.msk [vmem:[#allocation2 + $0xd0] sm:$0xff] %vm177, 0.0
    %181 = vst.msk [vmem:[#allocation2 + $0xd8] sm:$0xff] %vm177, 0.0
    %v182 = vld [vmem:[%s0] sm:$0xff]
    %v183 = vld [vmem:[%s0 + $0x8] sm:$0xff]
    %v184 = vld [vmem:[%s0 + $0x10] sm:$0xff]
    %v185 = vld [vmem:[%s0 + $0x18] sm:$0xff]
    %190 = vrot.lane.b32.xlu0 %v182, 126
    %v191 = vpop.permute.xlu0 %190
    %192 = vrot.lane.b32.xlu0 %v183, 126
    %v193 = vpop.permute.xlu0 %192
    %194 = vrot.lane.b32.xlu0 %v184, 126
    %v195 = vpop.permute.xlu0 %194
    %196 = vrot.lane.b32.xlu0 %v185, 126
    %v197 = vpop.permute.xlu0 %196
    %vm202 = vcmask 113664
    %203 = vst.msk [vmem:[#allocation2 + $0xc0] sm:$0xff] %vm202, %v191
    %204 = vst.msk [vmem:[#allocation2 + $0xc8] sm:$0xff] %vm202, %v193
    %205 = vst.msk [vmem:[#allocation2 + $0xd0] sm:$0xff] %vm202, %v195
    %206 = vst.msk [vmem:[#allocation2 + $0xd8] sm:$0xff] %vm202, %v197
    %vm207 = vcmask 130152
    %208 = vst.msk [vmem:[#allocation2 + $0xe0] sm:$0xff] %vm207, 0.0
    %209 = vst.msk [vmem:[#allocation2 + $0xe8] sm:$0xff] %vm207, 0.0
    %210 = vst.msk [vmem:[#allocation2 + $0xf0] sm:$0xff] %vm207, 0.0
    %211 = vst.msk [vmem:[#allocation2 + $0xf8] sm:$0xff] %vm207, 0.0
    %v212 = vld [vmem:[%s0] sm:$0xff]
    %v213 = vld [vmem:[%s0 + $0x8] sm:$0xff]
    %v214 = vld [vmem:[%s0 + $0x10] sm:$0xff]
    %v215 = vld [vmem:[%s0 + $0x18] sm:$0xff]
    %220 = vrot.lane.b32.xlu0 %v212, 125
    %v221 = vpop.permute.xlu0 %220
    %222 = vrot.lane.b32.xlu0 %v213, 125
    %v223 = vpop.permute.xlu0 %222
    %224 = vrot.lane.b32.xlu0 %v214, 125
    %v225 = vpop.permute.xlu0 %224
    %226 = vrot.lane.b32.xlu0 %v215, 125
    %v227 = vpop.permute.xlu0 %226
    %vm232 = vcmask 105472
    %233 = vst.msk [vmem:[#allocation2 + $0xe0] sm:$0xff] %vm232, %v221
    %234 = vst.msk [vmem:[#allocation2 + $0xe8] sm:$0xff] %vm232, %v223
    %235 = vst.msk [vmem:[#allocation2 + $0xf0] sm:$0xff] %vm232, %v225
    %236 = vst.msk [vmem:[#allocation2 + $0xf8] sm:$0xff] %vm232, %v227
    %vm237 = vcmask 130144
    %238 = vst.msk [vmem:[#allocation2 + $0x100] sm:$0xff] %vm237, 0.0
    %239 = vst.msk [vmem:[#allocation2 + $0x108] sm:$0xff] %vm237, 0.0
    %240 = vst.msk [vmem:[#allocation2 + $0x110] sm:$0xff] %vm237, 0.0
    %241 = vst.msk [vmem:[#allocation2 + $0x118] sm:$0xff] %vm237, 0.0
    %v242 = vld [vmem:[%s0] sm:$0xff]
    %v243 = vld [vmem:[%s0 + $0x8] sm:$0xff]
    %v244 = vld [vmem:[%s0 + $0x10] sm:$0xff]
    %v245 = vld [vmem:[%s0 + $0x18] sm:$0xff]
    %250 = vrot.lane.b32.xlu0 %v242, 124
    %v251 = vpop.permute.xlu0 %250
    %252 = vrot.lane.b32.xlu0 %v243, 124
    %v253 = vpop.permute.xlu0 %252
    %254 = vrot.lane.b32.xlu0 %v244, 124
    %v255 = vpop.permute.xlu0 %254
    %256 = vrot.lane.b32.xlu0 %v245, 124
    %v257 = vpop.permute.xlu0 %256
    %vm262 = vcmask 97280
    %263 = vst.msk [vmem:[#allocation2 + $0x100] sm:$0xff] %vm262, %v251
    %264 = vst.msk [vmem:[#allocation2 + $0x108] sm:$0xff] %vm262, %v253
    %265 = vst.msk [vmem:[#allocation2 + $0x110] sm:$0xff] %vm262, %v255
    %266 = vst.msk [vmem:[#allocation2 + $0x118] sm:$0xff] %vm262, %v257
    %vm267 = vcmask 162944
    %268 = vst.msk [vmem:[#allocation2] sm:$0xff] %vm267, 0.0
    %269 = vst.msk [vmem:[#allocation2 + $0x8] sm:$0xff] %vm267, 0.0
    %270 = vst.msk [vmem:[#allocation2 + $0x10] sm:$0xff] %vm267, 0.0
    %271 = vst.msk [vmem:[#allocation2 + $0x18] sm:$0xff] %vm267, 0.0
    %s272 = scalar_lea.vmem %s0, 32
    %v273 = vld [vmem:[%s272] sm:$0xff]
    %v274 = vld [vmem:[%s272 + $0x8] sm:$0xff]
    %v275 = vld [vmem:[%s272 + $0x10] sm:$0xff]
    %v276 = vld [vmem:[%s272 + $0x18] sm:$0xff]
    %281 = vrot.lane.b32.xlu0 %v273, 20
    %v282 = vpop.permute.xlu0 %281
    %283 = vrot.lane.b32.xlu0 %v274, 20
    %v284 = vpop.permute.xlu0 %283
    %285 = vrot.lane.b32.xlu0 %v275, 20
    %v286 = vpop.permute.xlu0 %285
    %287 = vrot.lane.b32.xlu0 %v276, 20
    %v288 = vpop.permute.xlu0 %287
    %vm293 = vcmask 261280
    %294 = vst.msk [vmem:[#allocation2] sm:$0xff] %vm293, %v282
    %295 = vst.msk [vmem:[#allocation2 + $0x8] sm:$0xff] %vm293, %v284
    %296 = vst.msk [vmem:[#allocation2 + $0x10] sm:$0xff] %vm293, %v286
    %297 = vst.msk [vmem:[#allocation2 + $0x18] sm:$0xff] %vm293, %v288
    %vm298 = vcmask 154752
    %299 = vst.msk [vmem:[#allocation2 + $0x20] sm:$0xff] %vm298, 0.0
    %300 = vst.msk [vmem:[#allocation2 + $0x28] sm:$0xff] %vm298, 0.0
    %301 = vst.msk [vmem:[#allocation2 + $0x30] sm:$0xff] %vm298, 0.0
    %302 = vst.msk [vmem:[#allocation2 + $0x38] sm:$0xff] %vm298, 0.0
    %v303 = vld [vmem:[%s272] sm:$0xff]
    %v304 = vld [vmem:[%s272 + $0x8] sm:$0xff]
    %v305 = vld [vmem:[%s272 + $0x10] sm:$0xff]
    %v306 = vld [vmem:[%s272 + $0x18] sm:$0xff]
    %311 = vrot.lane.b32.xlu0 %v303, 19
    %v312 = vpop.permute.xlu0 %311
    %313 = vrot.lane.b32.xlu0 %v304, 19
    %v314 = vpop.permute.xlu0 %313
    %315 = vrot.lane.b32.xlu0 %v305, 19
    %v316 = vpop.permute.xlu0 %315
    %317 = vrot.lane.b32.xlu0 %v306, 19
    %v318 = vpop.permute.xlu0 %317
    %vm323 = vcmask 261272
    %324 = vst.msk [vmem:[#allocation2 + $0x20] sm:$0xff] %vm323, %v312
    %325 = vst.msk [vmem:[#allocation2 + $0x28] sm:$0xff] %vm323, %v314
    %326 = vst.msk [vmem:[#allocation2 + $0x30] sm:$0xff] %vm323, %v316
    %327 = vst.msk [vmem:[#allocation2 + $0x38] sm:$0xff] %vm323, %v318
    %vm328 = vcmask 146560
    %329 = vst.msk [vmem:[#allocation2 + $0x40] sm:$0xff] %vm328, 0.0
    %330 = vst.msk [vmem:[#allocation2 + $0x48] sm:$0xff] %vm328, 0.0
    %331 = vst.msk [vmem:[#allocation2 + $0x50] sm:$0xff] %vm328, 0.0
    %332 = vst.msk [vmem:[#allocation2 + $0x58] sm:$0xff] %vm328, 0.0
    %v333 = vld [vmem:[%s272] sm:$0xff]
    %v334 = vld [vmem:[%s272 + $0x8] sm:$0xff]
    %v335 = vld [vmem:[%s272 + $0x10] sm:$0xff]
    %v336 = vld [vmem:[%s272 + $0x18] sm:$0xff]
    %341 = vrot.lane.b32.xlu0 %v333, 18
    %v342 = vpop.permute.xlu0 %341
    %343 = vrot.lane.b32.xlu0 %v334, 18
    %v344 = vpop.permute.xlu0 %343
    %345 = vrot.lane.b32.xlu0 %v335, 18
    %v346 = vpop.permute.xlu0 %345
    %347 = vrot.lane.b32.xlu0 %v336, 18
    %v348 = vpop.permute.xlu0 %347
    %vm353 = vcmask 261264
    %354 = vst.msk [vmem:[#allocation2 + $0x40] sm:$0xff] %vm353, %v342
    %355 = vst.msk [vmem:[#allocation2 + $0x48] sm:$0xff] %vm353, %v344
    %356 = vst.msk [vmem:[#allocation2 + $0x50] sm:$0xff] %vm353, %v346
    %357 = vst.msk [vmem:[#allocation2 + $0x58] sm:$0xff] %vm353, %v348
    %vm358 = vcmask 138368
    %359 = vst.msk [vmem:[#allocation2 + $0x60] sm:$0xff] %vm358, 0.0
    %360 = vst.msk [vmem:[#allocation2 + $0x68] sm:$0xff] %vm358, 0.0
    %361 = vst.msk [vmem:[#allocation2 + $0x70] sm:$0xff] %vm358, 0.0
    %362 = vst.msk [vmem:[#allocation2 + $0x78] sm:$0xff] %vm358, 0.0
    %v363 = vld [vmem:[%s272] sm:$0xff]
    %v364 = vld [vmem:[%s272 + $0x8] sm:$0xff]
    %v365 = vld [vmem:[%s272 + $0x10] sm:$0xff]
    %v366 = vld [vmem:[%s272 + $0x18] sm:$0xff]
    %371 = vrot.lane.b32.xlu0 %v363, 17
    %v372 = vpop.permute.xlu0 %371
    %373 = vrot.lane.b32.xlu0 %v364, 17
    %v374 = vpop.permute.xlu0 %373
    %375 = vrot.lane.b32.xlu0 %v365, 17
    %v376 = vpop.permute.xlu0 %375
    %377 = vrot.lane.b32.xlu0 %v366, 17
    %v378 = vpop.permute.xlu0 %377
    %vm383 = vcmask 261256
    %384 = vst.msk [vmem:[#allocation2 + $0x60] sm:$0xff] %vm383, %v372
    %385 = vst.msk [vmem:[#allocation2 + $0x68] sm:$0xff] %vm383, %v374
    %386 = vst.msk [vmem:[#allocation2 + $0x70] sm:$0xff] %vm383, %v376
    %387 = vst.msk [vmem:[#allocation2 + $0x78] sm:$0xff] %vm383, %v378
    %v388 = vld [vmem:[%s272] sm:$0xff]
    %v389 = vld [vmem:[%s272 + $0x8] sm:$0xff]
    %v390 = vld [vmem:[%s272 + $0x10] sm:$0xff]
    %v391 = vld [vmem:[%s272 + $0x18] sm:$0xff]
    %396 = vrot.lane.b32.xlu0 %v388, 16
    %v397 = vpop.permute.xlu0 %396
    %398 = vrot.lane.b32.xlu0 %v389, 16
    %v399 = vpop.permute.xlu0 %398
    %400 = vrot.lane.b32.xlu0 %v390, 16
    %v401 = vpop.permute.xlu0 %400
    %402 = vrot.lane.b32.xlu0 %v391, 16
    %v403 = vpop.permute.xlu0 %402
    %vm408 = vcmask 261248
    %409 = vst.msk [vmem:[#allocation2 + $0x80] sm:$0xff] %vm408, %v397
    %410 = vst.msk [vmem:[#allocation2 + $0x88] sm:$0xff] %vm408, %v399
    %411 = vst.msk [vmem:[#allocation2 + $0x90] sm:$0xff] %vm408, %v401
    %412 = vst.msk [vmem:[#allocation2 + $0x98] sm:$0xff] %vm408, %v403
    %vm413 = vcmask 261368
    %414 = vst.msk [vmem:[#allocation2 + $0xa0] sm:$0xff] %vm413, 0.0
    %415 = vst.msk [vmem:[#allocation2 + $0xa8] sm:$0xff] %vm413, 0.0
    %416 = vst.msk [vmem:[#allocation2 + $0xb0] sm:$0xff] %vm413, 0.0
    %417 = vst.msk [vmem:[#allocation2 + $0xb8] sm:$0xff] %vm413, 0.0
    %v418 = vld [vmem:[%s272] sm:$0xff]
    %v419 = vld [vmem:[%s272 + $0x8] sm:$0xff]
    %v420 = vld [vmem:[%s272 + $0x10] sm:$0xff]
    %v421 = vld [vmem:[%s272 + $0x18] sm:$0xff]
    %426 = vrot.lane.b32.xlu0 %v418, 15
    %v427 = vpop.permute.xlu0 %426
    %428 = vrot.lane.b32.xlu0 %v419, 15
    %v429 = vpop.permute.xlu0 %428
    %430 = vrot.lane.b32.xlu0 %v420, 15
    %v431 = vpop.permute.xlu0 %430
    %432 = vrot.lane.b32.xlu0 %v421, 15
    %v433 = vpop.permute.xlu0 %432
    %vm438 = vcmask 253056
    %439 = vst.msk [vmem:[#allocation2 + $0xa0] sm:$0xff] %vm438, %v427
    %440 = vst.msk [vmem:[#allocation2 + $0xa8] sm:$0xff] %vm438, %v429
    %441 = vst.msk [vmem:[#allocation2 + $0xb0] sm:$0xff] %vm438, %v431
    %442 = vst.msk [vmem:[#allocation2 + $0xb8] sm:$0xff] %vm438, %v433
    %vm443 = vcmask 261360
    %444 = vst.msk [vmem:[#allocation2 + $0xc0] sm:$0xff] %vm443, 0.0
    %445 = vst.msk [vmem:[#allocation2 + $0xc8] sm:$0xff] %vm443, 0.0
    %446 = vst.msk [vmem:[#allocation2 + $0xd0] sm:$0xff] %vm443, 0.0
    %447 = vst.msk [vmem:[#allocation2 + $0xd8] sm:$0xff] %vm443, 0.0
    %v448 = vld [vmem:[%s272] sm:$0xff]
    %v449 = vld [vmem:[%s272 + $0x8] sm:$0xff]
    %v450 = vld [vmem:[%s272 + $0x10] sm:$0xff]
    %v451 = vld [vmem:[%s272 + $0x18] sm:$0xff]
    %456 = vrot.lane.b32.xlu0 %v448, 14
    %v457 = vpop.permute.xlu0 %456
    %458 = vrot.lane.b32.xlu0 %v449, 14
    %v459 = vpop.permute.xlu0 %458
    %460 = vrot.lane.b32.xlu0 %v450, 14
    %v461 = vpop.permute.xlu0 %460
    %462 = vrot.lane.b32.xlu0 %v451, 14
    %v463 = vpop.permute.xlu0 %462
    %vm468 = vcmask 244864
    %469 = vst.msk [vmem:[#allocation2 + $0xc0] sm:$0xff] %vm468, %v457
    %470 = vst.msk [vmem:[#allocation2 + $0xc8] sm:$0xff] %vm468, %v459
    %471 = vst.msk [vmem:[#allocation2 + $0xd0] sm:$0xff] %vm468, %v461
    %472 = vst.msk [vmem:[#allocation2 + $0xd8] sm:$0xff] %vm468, %v463
    %vm473 = vcmask 261352
    %474 = vst.msk [vmem:[#allocation2 + $0xe0] sm:$0xff] %vm473, 0.0
    %475 = vst.msk [vmem:[#allocation2 + $0xe8] sm:$0xff] %vm473, 0.0
    %476 = vst.msk [vmem:[#allocation2 + $0xf0] sm:$0xff] %vm473, 0.0
    %477 = vst.msk [vmem:[#allocation2 + $0xf8] sm:$0xff] %vm473, 0.0
    %v478 = vld [vmem:[%s272] sm:$0xff]
    %v479 = vld [vmem:[%s272 + $0x8] sm:$0xff]
    %v480 = vld [vmem:[%s272 + $0x10] sm:$0xff]
    %v481 = vld [vmem:[%s272 + $0x18] sm:$0xff]
    %486 = vrot.lane.b32.xlu0 %v478, 13
    %v487 = vpop.permute.xlu0 %486
    %488 = vrot.lane.b32.xlu0 %v479, 13
    %v489 = vpop.permute.xlu0 %488
    %490 = vrot.lane.b32.xlu0 %v480, 13
    %v491 = vpop.permute.xlu0 %490
    %492 = vrot.lane.b32.xlu0 %v481, 13
    %v493 = vpop.permute.xlu0 %492
    %vm498 = vcmask 236672
    %499 = vst.msk [vmem:[#allocation2 + $0xe0] sm:$0xff] %vm498, %v487
    %500 = vst.msk [vmem:[#allocation2 + $0xe8] sm:$0xff] %vm498, %v489
    %501 = vst.msk [vmem:[#allocation2 + $0xf0] sm:$0xff] %vm498, %v491
    %502 = vst.msk [vmem:[#allocation2 + $0xf8] sm:$0xff] %vm498, %v493
    %vm503 = vcmask 261344
    %504 = vst.msk [vmem:[#allocation2 + $0x100] sm:$0xff] %vm503, 0.0
    %505 = vst.msk [vmem:[#allocation2 + $0x108] sm:$0xff] %vm503, 0.0
    %506 = vst.msk [vmem:[#allocation2 + $0x110] sm:$0xff] %vm503, 0.0
    %507 = vst.msk [vmem:[#allocation2 + $0x118] sm:$0xff] %vm503, 0.0
    %v508 = vld [vmem:[%s272] sm:$0xff]
    %v509 = vld [vmem:[%s272 + $0x8] sm:$0xff]
    %v510 = vld [vmem:[%s272 + $0x10] sm:$0xff]
    %v511 = vld [vmem:[%s272 + $0x18] sm:$0xff]
    %516 = vrot.lane.b32.xlu0 %v508, 12
    %v517 = vpop.permute.xlu0 %516
    %518 = vrot.lane.b32.xlu0 %v509, 12
    %v519 = vpop.permute.xlu0 %518
    %520 = vrot.lane.b32.xlu0 %v510, 12
    %v521 = vpop.permute.xlu0 %520
    %522 = vrot.lane.b32.xlu0 %v511, 12
    %v523 = vpop.permute.xlu0 %522
    %vm528 = vcmask 228480
    %529 = vst.msk [vmem:[#allocation2 + $0x100] sm:$0xff] %vm528, %v517
    %530 = vst.msk [vmem:[#allocation2 + $0x108] sm:$0xff] %vm528, %v519
    %531 = vst.msk [vmem:[#allocation2 + $0x110] sm:$0xff] %vm528, %v521
    %532 = vst.msk [vmem:[#allocation2 + $0x118] sm:$0xff] %vm528, %v523
    %v533 = vld [vmem:[%s2] sm:$0xff]
    %v534 = vld [vmem:[%s2 + $0x8] sm:$0xff]
    %v535 = vld [vmem:[%s2 + $0x10] sm:$0xff]
    %v536 = vld [vmem:[%s2 + $0x18] sm:$0xff]
    %v537 = vld [vmem:[%s2 + $0x20] sm:$0xff]
    %v538 = vld [vmem:[%s2 + $0x28] sm:$0xff]
    %v539 = vld [vmem:[%s2 + $0x30] sm:$0xff]
    %v540 = vld [vmem:[%s2 + $0x38] sm:$0xff]
    %v541 = vld [vmem:[%s2 + $0x40] sm:$0xff]
    %v542 = vld [vmem:[%s2 + $0x48] sm:$0xff]
    %v543 = vld [vmem:[%s2 + $0x50] sm:$0xff]
    %v544 = vld [vmem:[%s2 + $0x58] sm:$0xff]
    %v545 = vld [vmem:[%s2 + $0x60] sm:$0xff]
    %v546 = vld [vmem:[%s2 + $0x68] sm:$0xff]
    %v547 = vld [vmem:[%s2 + $0x70] sm:$0xff]
    %v548 = vld [vmem:[%s2 + $0x78] sm:$0xff]
    %v549 = vld [vmem:[%s2 + $0x80] sm:$0xff]
    %v550 = vld [vmem:[%s2 + $0x88] sm:$0xff]
    %v551 = vld [vmem:[%s2 + $0x90] sm:$0xff]
    %v552 = vld [vmem:[%s2 + $0x98] sm:$0xff]
    %v553 = vld [vmem:[%s2 + $0xa0] sm:$0xff]
    %v554 = vld [vmem:[%s2 + $0xa8] sm:$0xff]
    %v555 = vld [vmem:[%s2 + $0xb0] sm:$0xff]
    %v556 = vld [vmem:[%s2 + $0xb8] sm:$0xff]
    %v557 = vld [vmem:[#allocation2] sm:$0xff]
    %v558 = vld [vmem:[#allocation2 + $0x8] sm:$0xff]
    %v559 = vld [vmem:[#allocation2 + $0x10] sm:$0xff]
    %v560 = vld [vmem:[#allocation2 + $0x18] sm:$0xff]
    %v561 = vld [vmem:[#allocation2 + $0x20] sm:$0xff]
    %v562 = vld [vmem:[#allocation2 + $0x28] sm:$0xff]
    %v563 = vld [vmem:[#allocation2 + $0x30] sm:$0xff]
    %v564 = vld [vmem:[#allocation2 + $0x38] sm:$0xff]
    %v565 = vld [vmem:[#allocation2 + $0x40] sm:$0xff]
    %v566 = vld [vmem:[#allocation2 + $0x48] sm:$0xff]
    %v567 = vld [vmem:[#allocation2 + $0x50] sm:$0xff]
    %v568 = vld [vmem:[#allocation2 + $0x58] sm:$0xff]
    %v569 = vld [vmem:[#allocation2 + $0x60] sm:$0xff]
    %v570 = vld [vmem:[#allocation2 + $0x68] sm:$0xff]
    %v571 = vld [vmem:[#allocation2 + $0x70] sm:$0xff]
    %v572 = vld [vmem:[#allocation2 + $0x78] sm:$0xff]
    %v573 = vld [vmem:[#allocation2 + $0x80] sm:$0xff]
    %v574 = vld [vmem:[#allocation2 + $0x88] sm:$0xff]
    %v575 = vld [vmem:[#allocation2 + $0x90] sm:$0xff]
    %v576 = vld [vmem:[#allocation2 + $0x98] sm:$0xff]
    %v577 = vld [vmem:[#allocation2 + $0xa0] sm:$0xff]
    %v578 = vld [vmem:[#allocation2 + $0xa8] sm:$0xff]
    %v579 = vld [vmem:[#allocation2 + $0xb0] sm:$0xff]
    %v580 = vld [vmem:[#allocation2 + $0xb8] sm:$0xff]
    %v581 = vld [vmem:[#allocation2 + $0xc0] sm:$0xff]
    %v582 = vld [vmem:[#allocation2 + $0xc8] sm:$0xff]
    %v583 = vld [vmem:[#allocation2 + $0xd0] sm:$0xff]
    %v584 = vld [vmem:[#allocation2 + $0xd8] sm:$0xff]
    %v585 = vld [vmem:[#allocation2 + $0xe0] sm:$0xff]
    %v586 = vld [vmem:[#allocation2 + $0xe8] sm:$0xff]
    %v587 = vld [vmem:[#allocation2 + $0xf0] sm:$0xff]
    %v588 = vld [vmem:[#allocation2 + $0xf8] sm:$0xff]
    %v589 = vld [vmem:[#allocation2 + $0x100] sm:$0xff]
    %v590 = vld [vmem:[#allocation2 + $0x108] sm:$0xff]
    %v591 = vld [vmem:[#allocation2 + $0x110] sm:$0xff]
    %v592 = vld [vmem:[#allocation2 + $0x118] sm:$0xff]
    %v593 = vld [vmem:[%s3] sm:$0xff]
    %v594 = vld [vmem:[%s3 + $0x8] sm:$0xff]
    %v595 = vld [vmem:[%s3 + $0x10] sm:$0xff]
    %v596 = vld [vmem:[%s3 + $0x18] sm:$0xff]
    %v597 = vld [vmem:[%s3 + $0x20] sm:$0xff]
    %v598 = vld [vmem:[%s3 + $0x28] sm:$0xff]
    %v599 = vld [vmem:[%s3 + $0x30] sm:$0xff]
    %v600 = vld [vmem:[%s3 + $0x38] sm:$0xff]
    %602 = vset.pattern.permute.xlu0 0
    %603 = vperm.xlu0 %602, %v593
    %v604 = vpop.permute.xlu0 %603
    %607 = vset.pattern.permute.xlu0 0
    %608 = vperm.xlu0 %607, %v594
    %v609 = vpop.permute.xlu0 %608
    %612 = vset.pattern.permute.xlu0 0
    %613 = vperm.xlu0 %612, %v595
    %v614 = vpop.permute.xlu0 %613
    %617 = vset.pattern.permute.xlu0 0
    %618 = vperm.xlu0 %617, %v596
    %v619 = vpop.permute.xlu0 %618
    %622 = vset.pattern.permute.xlu0 0
    %623 = vperm.xlu0 %622, %v597
    %v624 = vpop.permute.xlu0 %623
    %627 = vset.pattern.permute.xlu0 0
    %628 = vperm.xlu0 %627, %v598
    %v629 = vpop.permute.xlu0 %628
    %632 = vset.pattern.permute.xlu0 0
    %633 = vperm.xlu0 %632, %v599
    %v634 = vpop.permute.xlu0 %633
    %637 = vset.pattern.permute.xlu0 0
    %638 = vperm.xlu0 %637, %v600
    %v639 = vpop.permute.xlu0 %638
    %vm641 = vcmask 261120
    %v643 = vsel %vm641, %v535, 0
    %v646 = vsel %vm641, %v538, 0
    %v649 = vsel %vm641, %v541, 0
    %v652 = vsel %vm641, %v544, 0
    %v655 = vsel %vm641, %v547, 0
    %v658 = vsel %vm641, %v550, 0
    %v661 = vsel %vm641, %v553, 0
    %v664 = vsel %vm641, %v556, 0
    %666 = vmatprep.subr.mxu0 0.0
    %667 = vmatpush1.msra.mxu0 %v557
    %668 = vmatprep.subr.mxu0 0.0
    %669 = vmatpush1.msra.mxu0 %v558
    %670 = vmatprep.subr.mxu0 0.0
    %671 = vmatpush1.msra.mxu0 %v559
    %672 = vmatprep.subr.mxu0 0.0
    %673 = vmatpush1.msra.mxu0 %v560
    %674 = vmatprep.subr.mxu0 0.0
    %675 = vmatpush1.msra.mxu0 %v561
    %676 = vmatprep.subr.mxu0 0.0
    %677 = vmatpush1.msra.mxu0 %v562
    %678 = vmatprep.subr.mxu0 0.0
    %679 = vmatpush1.msra.mxu0 %v563
    %680 = vmatprep.subr.mxu0 0.0
    %681 = vmatpush1.msra.mxu0 %v564
    %682 = vmatprep.subr.mxu0 0.0
    %683 = vmatpush1.msra.mxu0 %v565
    %684 = vmatprep.subr.mxu0 0.0
    %685 = vmatpush1.msra.mxu0 %v566
    %686 = vmatprep.subr.mxu0 0.0
    %687 = vmatpush1.msra.mxu0 %v567
    %688 = vmatprep.subr.mxu0 0.0
    %689 = vmatpush1.msra.mxu0 %v568
    %690 = vmatprep.subr.mxu0 0.0
    %691 = vmatpush1.msra.mxu0 %v569
    %692 = vmatprep.subr.mxu0 0.0
    %693 = vmatpush1.msra.mxu0 %v570
    %694 = vmatprep.subr.mxu0 0.0
    %695 = vmatpush1.msra.mxu0 %v571
    %696 = vmatprep.subr.mxu0 0.0
    %697 = vmatpush1.msra.mxu0 %v572
    %698 = vmatprep.subr.mxu0 0.0
    %699 = vmatpush1.msra.mxu0 %v573
    %700 = vmatprep.subr.mxu0 0.0
    %701 = vmatpush1.msra.mxu0 %v574
    %702 = vmatprep.subr.mxu0 0.0
    %703 = vmatpush1.msra.mxu0 %v575
    %704 = vmatprep.subr.mxu0 0.0
    %705 = vmatpush1.msra.mxu0 %v576
    %706 = vmatprep.subr.mxu0 0.0
    %707 = vmatpush1.msra.mxu0 %v577
    %708 = vmatprep.subr.mxu0 0.0
    %709 = vmatpush1.msra.mxu0 %v578
    %710 = vmatprep.subr.mxu0 0.0
    %711 = vmatpush1.msra.mxu0 %v579
    %712 = vmatprep.subr.mxu0 0.0
    %713 = vmatpush1.msra.mxu0 %v580
    %714 = vmatprep.subr.mxu0 0.0
    %715 = vmatpush1.msra.mxu0 %v581
    %716 = vmatprep.subr.mxu0 0.0
    %717 = vmatpush1.msra.mxu0 %v582
    %718 = vmatprep.subr.mxu0 0.0
    %719 = vmatpush1.msra.mxu0 %v583
    %720 = vmatprep.subr.mxu0 0.0
    %721 = vmatpush1.msra.mxu0 %v584
    %722 = vmatprep.subr.mxu0 0.0
    %723 = vmatpush1.msra.mxu0 %v585
    %724 = vmatprep.subr.mxu0 0.0
    %725 = vmatpush1.msra.mxu0 %v586
    %726 = vmatprep.subr.mxu0 0.0
    %727 = vmatpush1.msra.mxu0 %v587
    %728 = vmatprep.subr.mxu0 0.0
    %729 = vmatpush1.msra.mxu0 %v588
    %730 = vmatprep.mubr.f32.mxu0 %v534
    %731 = vmatmul.mubr.f32.gmra.mrb[0].mxu0 %v533
    %v732 = vpop.f32.mrb[0].mxu0
    %v733 = vadd.f32 %v604, %v732
    %v734 = vpop.f32.mrb[0].mxu0
    %735 = vmatprep.mubr.f32.mxu0 %v537
    %736 = vmatmul.mubr.f32.gmra.mrb[0].mxu0 %v536
    %v737 = vpop.f32.mrb[0].mxu0
    %v738 = vadd.f32 %v609, %v737
    %v739 = vpop.f32.mrb[0].mxu0
    %740 = vmatprep.mubr.f32.mxu0 %v540
    %741 = vmatmul.mubr.f32.gmra.mrb[0].mxu0 %v539
    %v742 = vpop.f32.mrb[0].mxu0
    %v743 = vadd.f32 %v614, %v742
    %v744 = vpop.f32.mrb[0].mxu0
    %745 = vmatprep.mubr.f32.mxu0 %v543
    %746 = vmatmul.mubr.f32.gmra.mrb[0].mxu0 %v542
    %v747 = vpop.f32.mrb[0].mxu0
    %v748 = vadd.f32 %v619, %v747
    %v749 = vpop.f32.mrb[0].mxu0
    %750 = vmatprep.mubr.f32.mxu0 %v546
    %751 = vmatmul.mubr.f32.gmra.mrb[0].mxu0 %v545
    %v752 = vpop.f32.mrb[0].mxu0
    %v753 = vadd.f32 %v624, %v752
    %v754 = vpop.f32.mrb[0].mxu0
    %755 = vmatprep.mubr.f32.mxu0 %v549
    %756 = vmatmul.mubr.f32.gmra.mrb[0].mxu0 %v548
    %v757 = vpop.f32.mrb[0].mxu0
    %v758 = vadd.f32 %v629, %v757
    %v759 = vpop.f32.mrb[0].mxu0
    %760 = vmatprep.mubr.f32.mxu0 %v552
    %761 = vmatmul.mubr.f32.gmra.mrb[0].mxu0 %v551
    %v762 = vpop.f32.mrb[0].mxu0
    %v763 = vadd.f32 %v634, %v762
    %v764 = vpop.f32.mrb[0].mxu0
    %765 = vmatprep.mubr.f32.mxu0 %v555
    %766 = vmatmul.mubr.f32.gmra.mrb[0].mxu0 %v554
    %v767 = vpop.f32.mrb[0].mxu0
    %v768 = vadd.f32 %v639, %v767
    %v769 = vpop.f32.mrb[0].mxu0
    %770 = vdwg.mxu0
    %771 = vmatprep.subr.mxu0 0.0
    %772 = vmatpush1.msra.mxu0 %v589
    %773 = vmatprep.subr.mxu0 0.0
    %774 = vmatpush1.msra.mxu0 %v590
    %775 = vmatprep.subr.mxu0 0.0
    %776 = vmatpush1.msra.mxu0 %v591
    %777 = vmatprep.subr.mxu0 0.0
    %778 = vmatpush1.msra.mxu0 %v592
    %779 = vmatprep.subr.mxu0 0.0
    %780 = vmatpush1.msra.mxu0 0.0
    %781 = vmatprep.subr.mxu0 0.0
    %782 = vmatpush1.msra.mxu0 0.0
    %783 = vmatprep.subr.mxu0 0.0
    %784 = vmatpush1.msra.mxu0 0.0
    %785 = vmatprep.subr.mxu0 0.0
    %786 = vmatpush1.msra.mxu0 0.0
    %787 = vmatprep.subr.mxu0 0.0
    %788 = vmatpush1.msra.mxu0 0.0
    %789 = vmatprep.subr.mxu0 0.0
    %790 = vmatpush1.msra.mxu0 0.0
    %791 = vmatprep.subr.mxu0 0.0
    %792 = vmatpush1.msra.mxu0 0.0
    %793 = vmatprep.subr.mxu0 0.0
    %794 = vmatpush1.msra.mxu0 0.0
    %795 = vmatprep.subr.mxu0 0.0
    %796 = vmatpush1.msra.mxu0 0.0
    %797 = vmatprep.subr.mxu0 0.0
    %798 = vmatpush1.msra.mxu0 0.0
    %799 = vmatprep.subr.mxu0 0.0
    %800 = vmatpush1.msra.mxu0 0.0
    %801 = vmatprep.subr.mxu0 0.0
    %802 = vmatpush1.msra.mxu0 0.0
    %803 = vmatprep.subr.mxu0 0.0
    %804 = vmatpush1.msra.mxu0 0.0
    %805 = vmatprep.subr.mxu0 0.0
    %806 = vmatpush1.msra.mxu0 0.0
    %807 = vmatprep.subr.mxu0 0.0
    %808 = vmatpush1.msra.mxu0 0.0
    %809 = vmatprep.subr.mxu0 0.0
    %810 = vmatpush1.msra.mxu0 0.0
    %811 = vmatprep.subr.mxu0 0.0
    %812 = vmatpush1.msra.mxu0 0.0
    %813 = vmatprep.subr.mxu0 0.0
    %814 = vmatpush1.msra.mxu0 0.0
    %815 = vmatprep.subr.mxu0 0.0
    %816 = vmatpush1.msra.mxu0 0.0
    %817 = vmatprep.subr.mxu0 0.0
    %818 = vmatpush1.msra.mxu0 0.0
    %819 = vmatprep.subr.mxu0 0.0
    %820 = vmatpush1.msra.mxu0 0.0
    %821 = vmatprep.subr.mxu0 0.0
    %822 = vmatpush1.msra.mxu0 0.0
    %823 = vmatprep.subr.mxu0 0.0
    %824 = vmatpush1.msra.mxu0 0.0
    %825 = vmatprep.subr.mxu0 0.0
    %826 = vmatpush1.msra.mxu0 0.0
    %827 = vmatprep.subr.mxu0 0.0
    %828 = vmatpush1.msra.mxu0 0.0
    %829 = vmatprep.subr.mxu0 0.0
    %830 = vmatpush1.msra.mxu0 0.0
    %831 = vmatprep.subr.mxu0 0.0
    %832 = vmatpush1.msra.mxu0 0.0
    %833 = vmatprep.subr.mxu0 0.0
    %834 = vmatpush1.msra.mxu0 0.0
    %835 = vmatprep.mubr.f32.mxu0 0.0
    %836 = vmatmul.mubr.f32.gmra.mrb[0].mxu0 %v643
    %v837 = vpop.f32.mrb[0].mxu0
    %v838 = vadd.f32 %v733, %v837
    %v839 = vpop.f32.mrb[0].mxu0
    %840 = vmatprep.mubr.f32.mxu0 0.0
    %841 = vmatmul.mubr.f32.gmra.mrb[0].mxu0 %v646
    %v842 = vpop.f32.mrb[0].mxu0
    %v843 = vadd.f32 %v738, %v842
    %v844 = vpop.f32.mrb[0].mxu0
    %845 = vmatprep.mubr.f32.mxu0 0.0
    %846 = vmatmul.mubr.f32.gmra.mrb[0].mxu0 %v649
    %v847 = vpop.f32.mrb[0].mxu0
    %v848 = vadd.f32 %v743, %v847
    %v849 = vpop.f32.mrb[0].mxu0
    %850 = vmatprep.mubr.f32.mxu0 0.0
    %851 = vmatmul.mubr.f32.gmra.mrb[0].mxu0 %v652
    %v852 = vpop.f32.mrb[0].mxu0
    %v853 = vadd.f32 %v748, %v852
    %v854 = vpop.f32.mrb[0].mxu0
    %855 = vmatprep.mubr.f32.mxu0 0.0
    %856 = vmatmul.mubr.f32.gmra.mrb[0].mxu0 %v655
    %v857 = vpop.f32.mrb[0].mxu0
    %v858 = vadd.f32 %v753, %v857
    %v859 = vpop.f32.mrb[0].mxu0
    %860 = vmatprep.mubr.f32.mxu0 0.0
    %861 = vmatmul.mubr.f32.gmra.mrb[0].mxu0 %v658
    %v862 = vpop.f32.mrb[0].mxu0
    %v863 = vadd.f32 %v758, %v862
    %v864 = vpop.f32.mrb[0].mxu0
    %865 = vmatprep.mubr.f32.mxu0 0.0
    %866 = vmatmul.mubr.f32.gmra.mrb[0].mxu0 %v661
    %v867 = vpop.f32.mrb[0].mxu0
    %v868 = vadd.f32 %v763, %v867
    %v869 = vpop.f32.mrb[0].mxu0
    %870 = vmatprep.mubr.f32.mxu0 0.0
    %871 = vmatmul.mubr.f32.gmra.mrb[0].mxu0 %v664
    %v872 = vpop.f32.mrb[0].mxu0
    %v873 = vadd.f32 %v768, %v872
    %v874 = vpop.f32.mrb[0].mxu0
    %875 = vdwg.mxu0
    %v876 = vld [vmem:[%s1] sm:$0x1]
    %vm877 = vcmp.gt.f32.partialorder %v876, 0.0
    %v878 = vsel %vm877, 1, 0
    %v879 = vlaneseq
    %v880 = vshrl.u32 %v879, 7
    %v881 = vsub.s32 0, %v880
    %v882 = vrot.slane %v878, %v881
    %vm883 = vcmp.eq.s32.totalorder %v882, 1
    %v884 = vsel %vm883, %v858, -inf
    %v885 = vsel %vm883, %v863, -inf
    %v886 = vsel %vm883, %v868, -inf
    %v887 = vsel %vm883, %v873, -inf
    %v888 = vsel %vm142, %v884, -inf
    %889 = vmax.xlane.f32.xlu0 %v888
    %v890 = vpop.xlane.xlu0 %889
    %v891 = vsel %vm142, %v885, -inf
    %892 = vmax.xlane.f32.xlu0 %v891
    %v893 = vpop.xlane.xlu0 %892
    %v894 = vsel %vm142, %v886, -inf
    %895 = vmax.xlane.f32.xlu0 %v894
    %v896 = vpop.xlane.xlu0 %895
    %v897 = vsel %vm142, %v887, -inf
    %898 = vmax.xlane.f32.xlu0 %v897
    %v899 = vpop.xlane.xlu0 %898
    %v900 = vsub.f32 %v884, %v890
    %v901 = vsub.f32 %v885, %v893
    %v902 = vsub.f32 %v886, %v896
    %v903 = vsub.f32 %v887, %v899
    %v904 = vmul.f32 %v900, 1.442695
    %v905 = vpow.pop %v904
    %v906 = vmul.f32 %v901, 1.442695
    %v907 = vpow.pop %v906
    %v908 = vmul.f32 %v902, 1.442695
    %v909 = vpow.pop %v908
    %v910 = vmul.f32 %v903, 1.442695
    %v911 = vpow.pop %v910
    %v912 = vsel %vm142, %v905, 0.0
    %913 = vadd.xlane.f32.xlu0 %v912
    %v914 = vpop.xlane.xlu0 %913
    %v915 = vsel %vm142, %v907, 0.0
    %916 = vadd.xlane.f32.xlu0 %v915
    %v917 = vpop.xlane.xlu0 %916
    %v918 = vsel %vm142, %v909, 0.0
    %919 = vadd.xlane.f32.xlu0 %v918
    %v920 = vpop.xlane.xlu0 %919
    %v921 = vsel %vm142, %v911, 0.0
    %922 = vadd.xlane.f32.xlu0 %v921
    %v923 = vpop.xlane.xlu0 %922
    %v924 = vmul.f32 %v838, %v905
    %v925 = vmul.f32 %v843, %v907
    %v926 = vmul.f32 %v848, %v909
    %v927 = vmul.f32 %v853, %v911
    %v928 = vsel %vm142, %v924, 0.0
    %929 = vadd.xlane.f32.xlu0 %v928
    %v930 = vpop.xlane.xlu0 %929
    %v931 = vsel %vm142, %v925, 0.0
    %932 = vadd.xlane.f32.xlu0 %v931
    %v933 = vpop.xlane.xlu0 %932
    %v934 = vsel %vm142, %v926, 0.0
    %935 = vadd.xlane.f32.xlu0 %v934
    %v936 = vpop.xlane.xlu0 %935
    %v937 = vsel %vm142, %v927, 0.0
    %938 = vadd.xlane.f32.xlu0 %v937
    %v939 = vpop.xlane.xlu0 %938
    %v940 = vrcp.pop %v914
    %v941 = vrcp.pop %v917
    %v942 = vrcp.pop %v920
    %v943 = vrcp.pop %v923
    %v944 = vmul.f32 %v930, %v940
    %v945 = vmul.f32 %v933, %v941
    %v946 = vmul.f32 %v936, %v942
    %v947 = vmul.f32 %v939, %v943
    %v948 = vsel %vm142, %v838, -inf
    %949 = vmax.xlane.f32.xlu0 %v948
    %v950 = vpop.xlane.xlu0 %949
    %v951 = vsel %vm142, %v843, -inf
    %952 = vmax.xlane.f32.xlu0 %v951
    %v953 = vpop.xlane.xlu0 %952
    %v954 = vsel %vm142, %v848, -inf
    %955 = vmax.xlane.f32.xlu0 %v954
    %v956 = vpop.xlane.xlu0 %955
    %v957 = vsel %vm142, %v853, -inf
    %958 = vmax.xlane.f32.xlu0 %v957
    %v959 = vpop.xlane.xlu0 %958
    %v960 = vld [vmem:[%s1 + $0x1] sm:$0x1]
    %vm961 = vcmp.gt.f32.partialorder %v960, 0.0
    %v962 = vsel %vm961, 1, 0
    %v963 = vlaneseq
    %v964 = vshrl.u32 %v963, 7
    %v965 = vsub.s32 0, %v964
    %v966 = vrot.slane %v962, %v965
    %vm967 = vcmp.eq.s32.totalorder %v966, 1
    %972 = vrot.lane.b32.xlu0 %v858, 112
    %v973 = vpop.permute.xlu0 %972
    %974 = vrot.lane.b32.xlu0 %v863, 112
    %v975 = vpop.permute.xlu0 %974
    %976 = vrot.lane.b32.xlu0 %v868, 112
    %v977 = vpop.permute.xlu0 %976
    %978 = vrot.lane.b32.xlu0 %v873, 112
    %v979 = vpop.permute.xlu0 %978
    %v984 = vsel %vm967, %v973, -inf
    %v985 = vsel %vm967, %v975, -inf
    %v986 = vsel %vm967, %v977, -inf
    %v987 = vsel %vm967, %v979, -inf
    %v988 = vsel %vm142, %v984, -inf
    %989 = vmax.xlane.f32.xlu0 %v988
    %v990 = vpop.xlane.xlu0 %989
    %v991 = vsel %vm142, %v985, -inf
    %992 = vmax.xlane.f32.xlu0 %v991
    %v993 = vpop.xlane.xlu0 %992
    %v994 = vsel %vm142, %v986, -inf
    %995 = vmax.xlane.f32.xlu0 %v994
    %v996 = vpop.xlane.xlu0 %995
    %v997 = vsel %vm142, %v987, -inf
    %998 = vmax.xlane.f32.xlu0 %v997
    %v999 = vpop.xlane.xlu0 %998
    %v1000 = vsub.f32 %v984, %v990
    %v1001 = vsub.f32 %v985, %v993
    %v1002 = vsub.f32 %v986, %v996
    %v1003 = vsub.f32 %v987, %v999
    %v1004 = vmul.f32 %v1000, 1.442695
    %v1005 = vpow.pop %v1004
    %v1006 = vmul.f32 %v1001, 1.442695
    %v1007 = vpow.pop %v1006
    %v1008 = vmul.f32 %v1002, 1.442695
    %v1009 = vpow.pop %v1008
    %v1010 = vmul.f32 %v1003, 1.442695
    %v1011 = vpow.pop %v1010
    %v1012 = vsel %vm142, %v1005, 0.0
    %1013 = vadd.xlane.f32.xlu0 %v1012
    %v1014 = vpop.xlane.xlu0 %1013
    %v1015 = vsel %vm142, %v1007, 0.0
    %1016 = vadd.xlane.f32.xlu0 %v1015
    %v1017 = vpop.xlane.xlu0 %1016
    %v1018 = vsel %vm142, %v1009, 0.0
    %1019 = vadd.xlane.f32.xlu0 %v1018
    %v1020 = vpop.xlane.xlu0 %1019
    %v1021 = vsel %vm142, %v1011, 0.0
    %1022 = vadd.xlane.f32.xlu0 %v1021
    %v1023 = vpop.xlane.xlu0 %1022
    %1028 = vrot.lane.b32.xlu0 %v1005, 16
    %v1029 = vpop.permute.xlu0 %1028
    %1030 = vrot.lane.b32.xlu0 %v1007, 16
    %v1031 = vpop.permute.xlu0 %1030
    %1032 = vrot.lane.b32.xlu0 %v1009, 16
    %v1033 = vpop.permute.xlu0 %1032
    %1034 = vrot.lane.b32.xlu0 %v1011, 16
    %v1035 = vpop.permute.xlu0 %1034
    %v1040 = vmul.f32 %v838, %v1029
    %v1041 = vmul.f32 %v843, %v1031
    %v1042 = vmul.f32 %v848, %v1033
    %v1043 = vmul.f32 %v853, %v1035
    %1048 = vrot.lane.b32.xlu0 %v1040, 112
    %v1049 = vpop.permute.xlu0 %1048
    %1050 = vrot.lane.b32.xlu0 %v1041, 112
    %v1051 = vpop.permute.xlu0 %1050
    %1052 = vrot.lane.b32.xlu0 %v1042, 112
    %v1053 = vpop.permute.xlu0 %1052
    %1054 = vrot.lane.b32.xlu0 %v1043, 112
    %v1055 = vpop.permute.xlu0 %1054
    %v1060 = vsel %vm142, %v1049, 0.0
    %1061 = vadd.xlane.f32.xlu0 %v1060
    %v1062 = vpop.xlane.xlu0 %1061
    %v1063 = vsel %vm142, %v1051, 0.0
    %1064 = vadd.xlane.f32.xlu0 %v1063
    %v1065 = vpop.xlane.xlu0 %1064
    %v1066 = vsel %vm142, %v1053, 0.0
    %1067 = vadd.xlane.f32.xlu0 %v1066
    %v1068 = vpop.xlane.xlu0 %1067
    %v1069 = vsel %vm142, %v1055, 0.0
    %1070 = vadd.xlane.f32.xlu0 %v1069
    %v1071 = vpop.xlane.xlu0 %1070
    %v1072 = vrcp.pop %v1014
    %v1073 = vrcp.pop %v1017
    %v1074 = vrcp.pop %v1020
    %v1075 = vrcp.pop %v1023
    %v1076 = vmul.f32 %v1062, %v1072
    %v1077 = vmul.f32 %v1065, %v1073
    %v1078 = vmul.f32 %v1068, %v1074
    %v1079 = vmul.f32 %v1071, %v1075
    %v1080 = vsel %vm408, %v838, -inf
    %1081 = vmax.xlane.f32.xlu0 %v1080
    %v1082 = vpop.xlane.xlu0 %1081
    %v1083 = vsel %vm408, %v843, -inf
    %1084 = vmax.xlane.f32.xlu0 %v1083
    %v1085 = vpop.xlane.xlu0 %1084
    %v1086 = vsel %vm408, %v848, -inf
    %1087 = vmax.xlane.f32.xlu0 %v1086
    %v1088 = vpop.xlane.xlu0 %1087
    %v1089 = vsel %vm408, %v853, -inf
    %1090 = vmax.xlane.f32.xlu0 %v1089
    %v1091 = vpop.xlane.xlu0 %1090
    %v1092 = vsel %vm108, %v944, %v1076
    %v1093 = vsel %vm108, %v945, %v1077
    %v1094 = vsel %vm108, %v946, %v1078
    %v1095 = vsel %vm108, %v947, %v1079
    %v1096 = vsel %vm108, %v950, %v1082
    %v1097 = vsel %vm108, %v953, %v1085
    %v1098 = vsel %vm108, %v956, %v1088
    %v1099 = vsel %vm108, %v959, %v1091
    %1100 = vxpose.xlu0.b32.start [1/16] %v1092, 128
    %1101 = vxpose.xlu0.b32.cont [2/16] %v1093, 128
    %1102 = vxpose.xlu0.b32.cont [3/16] %v1094, 128
    %1103 = vxpose.xlu0.b32.cont [4/16] %v1095, 128
    %1104 = vxpose.xlu0.b32.cont [5/16] %v1096, 128
    %1105 = vxpose.xlu0.b32.cont [6/16] %v1097, 128
    %1106 = vxpose.xlu0.b32.cont [7/16] %v1098, 128
    %1107 = vxpose.xlu0.b32.cont [8/16] %v1099, 128
    %1108 = vxpose.xlu0.b32.cont [9/16] 0.0, 128
    %1109 = vxpose.xlu0.b32.cont [10/16] 0.0, 128
    %1110 = vxpose.xlu0.b32.cont [11/16] 0.0, 128
    %1111 = vxpose.xlu0.b32.cont [12/16] 0.0, 128
    %1112 = vxpose.xlu0.b32.cont [13/16] 0.0, 128
    %1113 = vxpose.xlu0.b32.cont [14/16] 0.0, 128
    %1114 = vxpose.xlu0.b32.cont [15/16] 0.0, 128
    %1115 = vxpose.xlu0.b32.end [16/16] 0.0, 128
    %v1116 = vpop.trf.xlu0
    %v1117 = vpop.trf.xlu0
    %v1118 = vpop.trf.xlu0
    %v1119 = vpop.trf.xlu0
    %v1120 = vpop.trf.xlu0
    %v1121 = vpop.trf.xlu0
    %v1122 = vpop.trf.xlu0
    %v1123 = vpop.trf.xlu0
    %v1124 = vpop.trf.xlu0
    %v1125 = vpop.trf.xlu0
    %v1126 = vpop.trf.xlu0
    %v1127 = vpop.trf.xlu0
    %v1128 = vpop.trf.xlu0
    %v1129 = vpop.trf.xlu0
    %v1130 = vpop.trf.xlu0
    %v1131 = vpop.trf.xlu0
    %vm1132 = vcmask 517120
    %1133 = vst.msk [vmem:[#allocation3] sm:$0x3] %vm1132, %v1116
    // Predicated region
    $region18: #{light_attention.1} parent=1 // pred_check
      _
    $region19: #{light_attention.1} parent=1 // pred_check_branch
      %1135 = sbr.rel (0) target = $region21
    $region20: #{light_attention.1} parent=1 // pred_region
      %s1137 = ssub.s32 32, 32
      %1138 = vsyncadd [#allocation4], %s1137
      %s1140 = sshll.u32 [#allocation3], 4
      %s1141 = int_to_ptr.vmem [resolvable:$true] %s1140
      %1143 = dma.vmem_to_hbm [thread:$0]  %s1141, 32, %s4, [#allocation4]
    $region21: #{light_attention.1} parent=1 // pred_fallthru
      _
    // Predicated region
    $region22: #{light_attention.1} parent=1 // pred_check
      _
    $region23: #{light_attention.1} parent=1 // pred_check_branch
      %1145 = sbr.rel (0) target = $region25
    $region24: #{light_attention.1} parent=1 // pred_region
      %1146 = dma.done [#allocation4], 32
    $region25: #{light_attention.1} parent=1 // pred_fallthru
      _
    %1147 = vsyncpa [#allocation4], 1

</llo_original>
